<compile_context>
chip_gen: v7x
topology: tpu7x:2x2x1
jax: 0.10.0
libtpu: 0.0.40
codegen_flags: <defaults>
</compile_context>

<pallas_src>
import jax
import jax.numpy as jnp
from jax.experimental import pallas as pl
from jax.experimental.pallas import tpu as pltpu

# ---------------- config (small, consistent with cfgs.*) ----------------
HIDDEN = 32          # cfgs.HIDDEN_SIZE
HEADS = 4            # cfgs.ATTENTION_HEAD
DHEAD = HIDDEN // HEADS
FF = 64              # cfgs.FF_SIZE
LAYERS = 2           # cfgs.LAYER
MAX_TOKEN = 16       # cfgs.MAX_TOKEN
VOCAB = 50           # token_size
BATCH = 2
SEQ = MAX_TOKEN      # number of fused recurrent steps in the demo
EPS_ATTN = 1e-6      # RecurrentLinearAttention eps
EPS_LN = 1e-5        # nn.LayerNorm eps

# v6e/v7x can set this to jnp.bfloat16 (MXU-native, f32 accumulate); kept f32 so the
# rtol=1e-3 validation below holds unchanged on every generation (incl. v5e).
MATMUL_DTYPE = jnp.float32


def _layernorm(v, g, b):
    mu = jnp.mean(v, axis=-1, keepdims=True)
    var = jnp.mean((v - mu) ** 2, axis=-1, keepdims=True)
    return (v - mu) * jax.lax.rsqrt(var + EPS_LN) * g + b


def _elu_plus_one(v):
    # elu(x) + 1  (the linear-attention feature map)
    return jnp.where(v > 0, v + 1.0, jnp.exp(v))


def _mm(a, b):
    return jnp.dot(a.astype(MATMUL_DTYPE), b.astype(MATMUL_DTYPE),
                   preferred_element_type=jnp.float32)


# ---------------------------- Pallas kernel -----------------------------
def encoder_seq_kernel(ids_ref, si_in_ref, zi_in_ref,
                       emb_ref, pe_ref, mask_ref,
                       wqkv_ref, bqkv_ref, wo_ref, bo_ref,
                       ln1g_ref, ln1b_ref, ln2g_ref, ln2b_ref,
                       w1_ref, b1_ref, w2_ref, b2_ref,
                       lnfg_ref, lnfb_ref,
                       x_seq_ref, si_out_ref, zi_out_ref):
    T = ids_ref.shape[0]
    B = ids_ref.shape[1]
    VPAD = emb_ref.shape[0]

    # Recurrent state lives in the (VMEM-resident, HBM-aliased) output refs for the
    # whole sequence; copied in once, written back to HBM once at kernel end.
    si_out_ref[...] = si_in_ref[...]
    zi_out_ref[...] = zi_in_ref[...]

    # Loop-invariant values, hoisted (broadcast/iota are not CSE'd inside loops).
    emb = emb_ref[...]                                              # (VPAD, H)
    mask = mask_ref[...]                                            # (H, H) block-diag head mask
    vocab_iota = jax.lax.broadcasted_iota(jnp.int32, (B, VPAD), 1)  # (B, VPAD)

    def step(t, carry):
        # ---- embedding lookup (one-hot @ table on the MXU) + positional encoding ----
        ids_t = ids_ref[t]                                          # (B, 1) int32
        onehot = (vocab_iota == ids_t).astype(jnp.float32)          # (B, VPAD)
        x = _mm(onehot, emb) + pe_ref[t]                            # (B, H)

        for l in range(LAYERS):                                     # static unroll over layers
            # fused Q/K/V projection: a single (B,H) @ (H,3H) matmul
            qkv = _mm(x, wqkv_ref[l]) + bqkv_ref[l]                 # (B, 3H)
            Q = _elu_plus_one(qkv[:, 0 * HIDDEN:1 * HIDDEN])        # (B, H)
            K = _elu_plus_one(qkv[:, 1 * HIDDEN:2 * HIDDEN])        # (B, H)
            V = qkv[:, 2 * HIDDEN:3 * HIDDEN]                       # (B, H)

            # All heads at once: block-diagonal-masked full (H,H) outer-product state.
            Si = si_out_ref[l] + (K[:, :, None] * V[:, None, :]) * mask[None]   # (B, H, H)
            Zi = zi_out_ref[l] + K                                               # (B, H)
            si_out_ref[l] = Si                                      # lane-dense (last dim 32) store
            zi_out_ref[l] = Zi

            num = jnp.sum(Q[:, :, None] * Si, axis=1)               # (B, H)
            zden = _mm(Q * Zi, mask) + EPS_ATTN                     # per-head denom, broadcast on lanes
            r = pl.reciprocal(zden, approx=True)                    # EUP slot
            r = r * (2.0 - zden * r)                                # one Newton step -> ~f32 accuracy
            attn = num * r                                          # (B, H)

            attn = _mm(attn, wo_ref[l]) + bo_ref[l]
            # TODO(synk): dropout is identity (eval mode); training-time dropout not implemented.
            x = _layernorm(x + attn, ln1g_ref[l], ln1b_ref[l])
            y = jnp.maximum(_mm(x, w1_ref[l]) + b1_ref[l], 0.0)
            y = _mm(y, w2_ref[l]) + b2_ref[l]
            x = _layernorm(x + y, ln2g_ref[l], ln2b_ref[l])

        # final_normalization=True
        x_seq_ref[t] = _layernorm(x, lnfg_ref[...], lnfb_ref[...])
        return carry

    jax.lax.fori_loop(0, T, step, 0)


# ------------------------------- wrapper --------------------------------
def recurrent_encoder_forward(params, token_ids, i0=0, memory=None):
    """Run T = token_ids.shape[1] recurrent encoder steps fused in ONE pallas_call.

    token_ids: (B, T) int32, positions i0 .. i0+T-1 (must satisfy i0+T <= MAX_TOKEN).
    Returns (x_seq (T, B, HIDDEN), (Si, Zi)) with the lane-dense state layout above.
    """
    B, T = token_ids.shape
    if memory is None:
        si = jnp.zeros((LAYERS, B, HIDDEN, HIDDEN), jnp.float32)
        zi = jnp.zeros((LAYERS, B, HIDDEN), jnp.float32)
    else:
        si, zi = memory

    ids = token_ids.astype(jnp.int32).T.reshape(T, B, 1)               # (T, B, 1)
    pe_seq = jax.lax.dynamic_slice_in_dim(params['pe'], i0, T, 0)
    pe_seq = pe_seq.reshape(T, 1, HIDDEN)                              # (T, 1, H)

    # block-diagonal head mask (i, j in same head)
    head_id = jnp.arange(HIDDEN, dtype=jnp.int32) // DHEAD
    mask = (head_id[:, None] == head_id[None, :]).astype(jnp.float32)  # (H, H)

    # pad the embedding table rows to a multiple of 8 sublanes (padded one-hot cols are 0)
    vpad = ((VOCAB + 7) // 8) * 8
    emb_pad = jnp.zeros((vpad, HIDDEN), jnp.float32).at[:VOCAB].set(params['emb'])

    inputs = [ids, si, zi, emb_pad, pe_seq, mask,
              params['wqkv'], params['bqkv'], params['wo'], params['bo'],
              params['ln1g'], params['ln1b'], params['ln2g'], params['ln2b'],
              params['w1'], params['b1'], params['w2'], params['b2'],
              params['lnfg'], params['lnfb']]

    out_shapes = (jax.ShapeDtypeStruct((T, B, HIDDEN), jnp.float32),
                  jax.ShapeDtypeStruct(si.shape, jnp.float32),
                  jax.ShapeDtypeStruct(zi.shape, jnp.float32))

    vmem = pltpu.MemorySpace.VMEM
    in_specs = [pl.BlockSpec(memory_space=vmem) for _ in inputs]
    out_specs = tuple(pl.BlockSpec(memory_space=vmem) for _ in range(3))

    x_seq, si_out, zi_out = pl.pallas_call(
        encoder_seq_kernel,
        out_shape=out_shapes,
        in_specs=in_specs,
        out_specs=out_specs,
        input_output_aliases={1: 1, 2: 2},   # Si, Zi updated in place
    )(*inputs)
    return x_seq, (si_out, zi_out)


# -------------------------- pure-JAX reference --------------------------
def reference_forward(params, token_ids, i0):
    """Step-by-step per-head reference (matches the original torch math)."""
    hp = jax.lax.Precision.HIGHEST
    B, T = token_ids.shape
    Si = jnp.zeros((LAYERS, HEADS, B, DHEAD, DHEAD), jnp.float32)
    Zi = jnp.zeros((LAYERS, HEADS, B, DHEAD), jnp.float32)
    xs = []
    for t in range(T):
        x = jnp.take(params['emb'], token_ids[:, t], axis=0)          # (B, H)
        x = x + params['pe'][i0 + t]
        for l in range(LAYERS):
            qkv = jnp.dot(x, params['wqkv'][l], precision=hp) + params['bqkv'][l][0]
            q, k, v = qkv[:, :HIDDEN], qkv[:, HIDDEN:2 * HIDDEN], qkv[:, 2 * HIDDEN:]
            Q = _elu_plus_one(q).reshape(B, HEADS, DHEAD)
            K = _elu_plus_one(k).reshape(B, HEADS, DHEAD)
            V = v.reshape(B, HEADS, DHEAD)
            Si = Si.at[l].add(jnp.einsum('bhd,bhm->hbdm', K, V))
            Zi = Zi.at[l].add(jnp.transpose(K, (1, 0, 2)))
            zden = jnp.einsum('bhd,hbd->bh', Q, Zi[l]) + EPS_ATTN
            num = jnp.einsum('bhd,hbdm->bhm', Q, Si[l])
            attn = (num / zden[:, :, None]).reshape(B, HIDDEN)
            attn = jnp.dot(attn, params['wo'][l], precision=hp) + params['bo'][l][0]
            x = _layernorm(x + attn, params['ln1g'][l][0], params['ln1b'][l][0])
            y = jnp.maximum(jnp.dot(x, params['w1'][l], precision=hp) + params['b1'][l][0], 0.0)
            y = jnp.dot(y, params['w2'][l], precision=hp) + params['b2'][l][0]
            x = _layernorm(x + y, params['ln2g'][l][0], params['ln2b'][l][0])
        xs.append(_layernorm(x, params['lnfg'][0], params['lnfb'][0]))
    return jnp.stack(xs, axis=0), Si, Zi


def _si_to_head_blocks(si_full):
    # (LAYERS, B, H, H) block-diagonal -> (LAYERS, HEADS, B, D, D)
    return jnp.stack([si_full[:, :, h * DHEAD:(h + 1) * DHEAD, h * DHEAD:(h + 1) * DHEAD]
                      for h in range(HEADS)], axis=1)


def _zi_to_heads(zi_full):
    # (LAYERS, B, H) -> (LAYERS, HEADS, B, D)
    return zi_full.reshape(LAYERS, -1, HEADS, DHEAD).transpose(0, 2, 1, 3)


# ------------------------------- params ---------------------------------
def _xavier_uniform(key, shape):
    fan_in, fan_out = shape[-2], shape[-1]
    bound = (6.0 / (fan_in + fan_out)) ** 0.5
    return jax.random.uniform(key, shape, jnp.float32, -bound, bound)


def _sinusoidal_pe(max_len, dim):
    pos = jnp.arange(max_len, dtype=jnp.float32)[:, None]
    div = jnp.exp(jnp.arange(0, dim, 2, dtype=jnp.float32) * (-jnp.log(10000.0) / dim))
    pe = jnp.zeros((max_len, dim), jnp.float32)
    pe = pe.at[:, 0::2].set(jnp.sin(pos * div))
    pe = pe.at[:, 1::2].set(jnp.cos(pos * div))
    return pe


def init_params(key):
    ks = jax.random.split(key, 8)
    p = {}
    p['emb'] = jax.random.normal(ks[0], (VOCAB, HIDDEN), jnp.float32)   # nn.Embedding default N(0,1)
    p['pe'] = _sinusoidal_pe(MAX_TOKEN, HIDDEN)
    wq = _xavier_uniform(ks[1], (LAYERS, HIDDEN, HIDDEN))
    wk = _xavier_uniform(ks[2], (LAYERS, HIDDEN, HIDDEN))
    wv = _xavier_uniform(ks[3], (LAYERS, HIDDEN, HIDDEN))
    p['wqkv'] = jnp.concatenate([wq, wk, wv], axis=-1)                  # packed (LAYERS, H, 3H)
    p['bqkv'] = jnp.zeros((LAYERS, 1, 3 * HIDDEN), jnp.float32)
    p['wo'] = _xavier_uniform(ks[4], (LAYERS, HIDDEN, HIDDEN))
    p['bo'] = jnp.zeros((LAYERS, 1, HIDDEN), jnp.float32)
    p['w1'] = _xavier_uniform(ks[5], (LAYERS, HIDDEN, FF))
    p['b1'] = jnp.zeros((LAYERS, 1, FF), jnp.float32)
    p['w2'] = _xavier_uniform(ks[6], (LAYERS, FF, HIDDEN))
    p['b2'] = jnp.zeros((LAYERS, 1, HIDDEN), jnp.float32)
    p['ln1g'] = jnp.ones((LAYERS, 1, HIDDEN), jnp.float32)
    p['ln1b'] = jnp.zeros((LAYERS, 1, HIDDEN), jnp.float32)
    p['ln2g'] = jnp.ones((LAYERS, 1, HIDDEN), jnp.float32)
    p['ln2b'] = jnp.zeros((LAYERS, 1, HIDDEN), jnp.float32)
    p['lnfg'] = jnp.ones((1, HIDDEN), jnp.float32)
    p['lnfb'] = jnp.zeros((1, HIDDEN), jnp.float32)
    return p


# -------------------------------- main -----------------------------------
if __name__ == "__main__":
    key = jax.random.PRNGKey(0)
    pkey, tkey = jax.random.split(key)
    params = init_params(pkey)

    token_ids = jax.random.randint(tkey, (BATCH, SEQ), 0, VOCAB)        # (B, T) int32

    # Fused run: all SEQ recurrent steps in a single pallas_call.
    x_seq, (si, zi) = recurrent_encoder_forward(params, token_ids, i0=0, memory=None)
    jax.block_until_ready(x_seq)

    x_ref, si_ref, zi_ref = reference_forward(params, token_ids, 0)

    assert jnp.allclose(x_seq, x_ref, rtol=1e-3, atol=1e-3), "x mismatch (fused sequence)"
    assert jnp.allclose(_si_to_head_blocks(si), si_ref, rtol=1e-3, atol=1e-3), "Si mismatch"
    assert jnp.allclose(_zi_to_heads(zi), zi_ref, rtol=1e-3, atol=1e-3), "Zi mismatch"

    # Recurrent-memory handoff: two fused half-sequences == one full sequence.
    half = SEQ // 2
    xa, mem_a = recurrent_encoder_forward(params, token_ids[:, :half], i0=0, memory=None)
    xb, mem_b = recurrent_encoder_forward(params, token_ids[:, half:], i0=half, memory=mem_a)
    jax.block_until_ready(xb)
    x_cat = jnp.concatenate([xa, xb], axis=0)
    assert jnp.allclose(x_cat, x_ref, rtol=1e-3, atol=1e-3), "x mismatch (memory handoff)"
    assert jnp.allclose(_si_to_head_blocks(mem_b[0]), si_ref, rtol=1e-3, atol=1e-3), \
        "Si mismatch (memory handoff)"
    assert jnp.allclose(_zi_to_heads(mem_b[1]), zi_ref, rtol=1e-3, atol=1e-3), \
        "Zi mismatch (memory handoff)"

    print("KERNEL_OK")
</pallas_src>

<mosaic_0001>
module attributes {stable_mosaic.version = 11 : i64} {
  func.func @encoder_seq_kernel(%arg0: memref<16x2x1xi32, #tpu.memory_space<vmem>>, %arg1: memref<2x2x32x32xf32, #tpu.memory_space<vmem>>, %arg2: memref<2x2x32xf32, #tpu.memory_space<vmem>>, %arg3: memref<56x32xf32, #tpu.memory_space<vmem>>, %arg4: memref<16x1x32xf32, #tpu.memory_space<vmem>>, %arg5: memref<32x32xf32, #tpu.memory_space<vmem>>, %arg6: memref<2x32x96xf32, #tpu.memory_space<vmem>>, %arg7: memref<2x1x96xf32, #tpu.memory_space<vmem>>, %arg8: memref<2x32x32xf32, #tpu.memory_space<vmem>>, %arg9: memref<2x1x32xf32, #tpu.memory_space<vmem>>, %arg10: memref<2x1x32xf32, #tpu.memory_space<vmem>>, %arg11: memref<2x1x32xf32, #tpu.memory_space<vmem>>, %arg12: memref<2x1x32xf32, #tpu.memory_space<vmem>>, %arg13: memref<2x1x32xf32, #tpu.memory_space<vmem>>, %arg14: memref<2x32x64xf32, #tpu.memory_space<vmem>>, %arg15: memref<2x1x64xf32, #tpu.memory_space<vmem>>, %arg16: memref<2x64x32xf32, #tpu.memory_space<vmem>>, %arg17: memref<2x1x32xf32, #tpu.memory_space<vmem>>, %arg18: memref<1x32xf32, #tpu.memory_space<vmem>>, %arg19: memref<1x32xf32, #tpu.memory_space<vmem>>, %arg20: memref<16x2x32xf32, #tpu.memory_space<vmem>>, %arg21: memref<2x2x32x32xf32, #tpu.memory_space<vmem>>, %arg22: memref<2x2x32xf32, #tpu.memory_space<vmem>>) attributes {dimension_semantics = [], scalar_prefetch = 0 : i64, scratch_operands = 0 : i64, tpu.core_type = #tpu.core_type<tc>} {
    %c0 = arith.constant 0 : index
    %c0_0 = arith.constant 0 : index
    %c0_1 = arith.constant 0 : index
    %c0_2 = arith.constant 0 : index
    %0 = vector.load %arg1[%c0, %c0_0, %c0_1, %c0_2] : memref<2x2x32x32xf32, #tpu.memory_space<vmem>>, vector<2x2x32x32xf32>
    %c0_3 = arith.constant 0 : index
    %c0_4 = arith.constant 0 : index
    %c0_5 = arith.constant 0 : index
    %c0_6 = arith.constant 0 : index
    %1 = vector.load %arg21[%c0_3, %c0_4, %c0_5, %c0_6] : memref<2x2x32x32xf32, #tpu.memory_space<vmem>>, vector<2x2x32x32xf32>
    tpu.vector_store %arg21[%c0_3, %c0_4, %c0_5, %c0_6], %0 {strides = array<i32>} : memref<2x2x32x32xf32, #tpu.memory_space<vmem>>, vector<2x2x32x32xf32>,
    %c0_7 = arith.constant 0 : index
    %c0_8 = arith.constant 0 : index
    %c0_9 = arith.constant 0 : index
    %2 = vector.load %arg2[%c0_7, %c0_8, %c0_9] : memref<2x2x32xf32, #tpu.memory_space<vmem>>, vector<2x2x32xf32>
    %c0_10 = arith.constant 0 : index
    %c0_11 = arith.constant 0 : index
    %c0_12 = arith.constant 0 : index
    %3 = vector.load %arg22[%c0_10, %c0_11, %c0_12] : memref<2x2x32xf32, #tpu.memory_space<vmem>>, vector<2x2x32xf32>
    tpu.vector_store %arg22[%c0_10, %c0_11, %c0_12], %2 {strides = array<i32>} : memref<2x2x32xf32, #tpu.memory_space<vmem>>, vector<2x2x32xf32>,
    %c0_13 = arith.constant 0 : index
    %c0_14 = arith.constant 0 : index
    %4 = vector.load %arg3[%c0_13, %c0_14] : memref<56x32xf32, #tpu.memory_space<vmem>>, vector<56x32xf32>
    %c0_15 = arith.constant 0 : index
    %c0_16 = arith.constant 0 : index
    %5 = vector.load %arg5[%c0_15, %c0_16] : memref<32x32xf32, #tpu.memory_space<vmem>>, vector<32x32xf32>
    %6 = tpu.iota {dimensions = array<i32: 1>} : vector<2x56xi32>
    %c0_i32 = arith.constant 0 : i32
    %c16_i32 = arith.constant 16 : i32
    %7 = arith.addi %c0_i32, %c16_i32 : i32
    %c1_i32 = arith.constant 1 : i32
    scf.for %arg23 = %c0_i32 to %7 step %c1_i32  : i32 {
      %8 = arith.index_cast %arg23 : i32 to index
      %c0_18 = arith.constant 0 : index
      %c0_19 = arith.constant 0 : index
      %9 = vector.load %arg0[%8, %c0_18, %c0_19] : memref<16x2x1xi32, #tpu.memory_space<vmem>>, vector<1x2x1xi32>
      %10 = vector.shape_cast %9 : vector<1x2x1xi32> to vector<2x1xi32>
      %11 = vector.broadcast %10 : vector<2x1xi32> to vector<2x56xi32>
      %12 = arith.cmpi eq, %6, %11 : vector<2x56xi32>
      %13 = arith.extui %12 : vector<2x56xi1> to vector<2x56xi32>
      %14 = arith.sitofp %13 : vector<2x56xi32> to vector<2x56xf32>
      %cst = arith.constant dense<0.000000e+00> : vector<2x32xf32>
      %15 = tpu.matmul %14, %4, %cst {dimension_numbers = #tpu.dot_dimension_numbers<[1], [0], [0], [1], [0, 0, 1, 1], [], []>} : vector<2x56xf32>, vector<56x32xf32>, vector<2x32xf32> -> vector<2x32xf32>
      %16 = arith.index_cast %arg23 : i32 to index
      %c0_20 = arith.constant 0 : index
      %c0_21 = arith.constant 0 : index
      %17 = vector.load %arg4[%16, %c0_20, %c0_21] : memref<16x1x32xf32, #tpu.memory_space<vmem>>, vector<1x1x32xf32>
      %18 = vector.shape_cast %17 : vector<1x1x32xf32> to vector<1x32xf32>
      %19 = vector.broadcast %18 : vector<1x32xf32> to vector<2x32xf32>
      %20 = arith.addf %15, %19 : vector<2x32xf32>
      %c0_22 = arith.constant 0 : index
      %c0_23 = arith.constant 0 : index
      %c0_24 = arith.constant 0 : index
      %21 = vector.load %arg6[%c0_22, %c0_23, %c0_24] : memref<2x32x96xf32, #tpu.memory_space<vmem>>, vector<1x32x96xf32>
      %22 = vector.shape_cast %21 : vector<1x32x96xf32> to vector<32x96xf32>
      %cst_25 = arith.constant dense<0.000000e+00> : vector<2x96xf32>
      %23 = tpu.matmul %20, %22, %cst_25 {dimension_numbers = #tpu.dot_dimension_numbers<[1], [0], [0], [1], [0, 0, 1, 1], [], []>} : vector<2x32xf32>, vector<32x96xf32>, vector<2x96xf32> -> vector<2x96xf32>
      %c0_26 = arith.constant 0 : index
      %c0_27 = arith.constant 0 : index
      %c0_28 = arith.constant 0 : index
      %24 = vector.load %arg7[%c0_26, %c0_27, %c0_28] : memref<2x1x96xf32, #tpu.memory_space<vmem>>, vector<1x1x96xf32>
      %25 = vector.shape_cast %24 : vector<1x1x96xf32> to vector<1x96xf32>
      %26 = vector.broadcast %25 : vector<1x96xf32> to vector<2x96xf32>
      %27 = arith.addf %23, %26 : vector<2x96xf32>
      %28 = vector.extract_strided_slice %27 {offsets = [0, 0], sizes = [2, 32], strides = [1, 1]} : vector<2x96xf32> to vector<2x32xf32>
      %cst_29 = arith.constant 0.000000e+00 : f32
      %29 = vector.broadcast %cst_29 : f32 to vector<2x32xf32>
      %30 = arith.cmpf ogt, %28, %29 : vector<2x32xf32>
      %cst_30 = arith.constant 1.000000e+00 : f32
      %31 = vector.broadcast %cst_30 : f32 to vector<2x32xf32>
      %32 = arith.addf %28, %31 : vector<2x32xf32>
      %33 = math.exp %28 : vector<2x32xf32>
      %34 = arith.select %30, %32, %33 : vector<2x32xi1>, vector<2x32xf32>
      %35 = vector.extract_strided_slice %27 {offsets = [0, 32], sizes = [2, 32], strides = [1, 1]} : vector<2x96xf32> to vector<2x32xf32>
      %cst_31 = arith.constant 0.000000e+00 : f32
      %36 = vector.broadcast %cst_31 : f32 to vector<2x32xf32>
      %37 = arith.cmpf ogt, %35, %36 : vector<2x32xf32>
      %cst_32 = arith.constant 1.000000e+00 : f32
      %38 = vector.broadcast %cst_32 : f32 to vector<2x32xf32>
      %39 = arith.addf %35, %38 : vector<2x32xf32>
      %40 = math.exp %35 : vector<2x32xf32>
      %41 = arith.select %37, %39, %40 : vector<2x32xi1>, vector<2x32xf32>
      %42 = vector.extract_strided_slice %27 {offsets = [0, 64], sizes = [2, 32], strides = [1, 1]} : vector<2x96xf32> to vector<2x32xf32>
      %c0_33 = arith.constant 0 : index
      %c0_34 = arith.constant 0 : index
      %c0_35 = arith.constant 0 : index
      %c0_36 = arith.constant 0 : index
      %43 = vector.load %arg21[%c0_33, %c0_34, %c0_35, %c0_36] : memref<2x2x32x32xf32, #tpu.memory_space<vmem>>, vector<1x2x32x32xf32>
      %44 = vector.shape_cast %43 : vector<1x2x32x32xf32> to vector<2x32x32xf32>
      %45 = vector.shape_cast %41 : vector<2x32xf32> to vector<2x32x1xf32>
      %46 = vector.shape_cast %42 : vector<2x32xf32> to vector<2x1x32xf32>
      %47 = vector.broadcast %45 : vector<2x32x1xf32> to vector<2x32x32xf32>
      %48 = vector.broadcast %46 : vector<2x1x32xf32> to vector<2x32x32xf32>
      %49 = arith.mulf %47, %48 : vector<2x32x32xf32>
      %50 = vector.shape_cast %5 : vector<32x32xf32> to vector<1x32x32xf32>
      %51 = vector.broadcast %50 : vector<1x32x32xf32> to vector<2x32x32xf32>
      %52 = arith.mulf %49, %51 : vector<2x32x32xf32>
      %53 = arith.addf %44, %52 : vector<2x32x32xf32>
      %c0_37 = arith.constant 0 : index
      %c0_38 = arith.constant 0 : index
      %c0_39 = arith.constant 0 : index
      %54 = vector.load %arg22[%c0_37, %c0_38, %c0_39] : memref<2x2x32xf32, #tpu.memory_space<vmem>>, vector<1x2x32xf32>
      %55 = vector.shape_cast %54 : vector<1x2x32xf32> to vector<2x32xf32>
      %56 = arith.addf %55, %41 : vector<2x32xf32>
      %c0_40 = arith.constant 0 : index
      %c0_41 = arith.constant 0 : index
      %c0_42 = arith.constant 0 : index
      %c0_43 = arith.constant 0 : index
      %57 = vector.load %arg21[%c0_40, %c0_41, %c0_42, %c0_43] : memref<2x2x32x32xf32, #tpu.memory_space<vmem>>, vector<1x2x32x32xf32>
      %58 = vector.shape_cast %57 : vector<1x2x32x32xf32> to vector<2x32x32xf32>
      %59 = vector.shape_cast %53 : vector<2x32x32xf32> to vector<1x2x32x32xf32>
      tpu.vector_store %arg21[%c0_40, %c0_41, %c0_42, %c0_43], %59 {strides = array<i32>} : memref<2x2x32x32xf32, #tpu.memory_space<vmem>>, vector<1x2x32x32xf32>,
      %c0_44 = arith.constant 0 : index
      %c0_45 = arith.constant 0 : index
      %c0_46 = arith.constant 0 : index
      %60 = vector.load %arg22[%c0_44, %c0_45, %c0_46] : memref<2x2x32xf32, #tpu.memory_space<vmem>>, vector<1x2x32xf32>
      %61 = vector.shape_cast %60 : vector<1x2x32xf32> to vector<2x32xf32>
      %62 = vector.shape_cast %56 : vector<2x32xf32> to vector<1x2x32xf32>
      tpu.vector_store %arg22[%c0_44, %c0_45, %c0_46], %62 {strides = array<i32>} : memref<2x2x32xf32, #tpu.memory_space<vmem>>, vector<1x2x32xf32>,
      %63 = vector.shape_cast %34 : vector<2x32xf32> to vector<2x32x1xf32>
      %64 = vector.broadcast %63 : vector<2x32x1xf32> to vector<2x32x32xf32>
      %65 = arith.mulf %64, %53 : vector<2x32x32xf32>
      %cst_47 = arith.constant dense<0.000000e+00> : vector<2x32xf32>
      %66 = vector.multi_reduction <add>, %65, %cst_47 [1] : vector<2x32x32xf32> to vector<2x32xf32>
      %67 = arith.mulf %34, %56 : vector<2x32xf32>
      %cst_48 = arith.constant dense<0.000000e+00> : vector<2x32xf32>
      %68 = tpu.matmul %67, %5, %cst_48 {dimension_numbers = #tpu.dot_dimension_numbers<[1], [0], [0], [1], [0, 0, 1, 1], [], []>} : vector<2x32xf32>, vector<32x32xf32>, vector<2x32xf32> -> vector<2x32xf32>
      %cst_49 = arith.constant 9.99999997E-7 : f32
      %69 = vector.broadcast %cst_49 : f32 to vector<2x32xf32>
      %70 = arith.addf %68, %69 : vector<2x32xf32>
      %71 = tpu.reciprocal %70 {approx = true} : vector<2x32xf32> -> vector<2x32xf32>
      %72 = arith.mulf %70, %71 : vector<2x32xf32>
      %cst_50 = arith.constant 2.000000e+00 : f32
      %73 = vector.broadcast %cst_50 : f32 to vector<2x32xf32>
      %74 = arith.subf %73, %72 : vector<2x32xf32>
      %75 = arith.mulf %71, %74 : vector<2x32xf32>
      %76 = arith.mulf %66, %75 : vector<2x32xf32>
      %c0_51 = arith.constant 0 : index
      %c0_52 = arith.constant 0 : index
      %c0_53 = arith.constant 0 : index
      %77 = vector.load %arg8[%c0_51, %c0_52, %c0_53] : memref<2x32x32xf32, #tpu.memory_space<vmem>>, vector<1x32x32xf32>
      %78 = vector.shape_cast %77 : vector<1x32x32xf32> to vector<32x32xf32>
      %cst_54 = arith.constant dense<0.000000e+00> : vector<2x32xf32>
      %79 = tpu.matmul %76, %78, %cst_54 {dimension_numbers = #tpu.dot_dimension_numbers<[1], [0], [0], [1], [0, 0, 1, 1], [], []>} : vector<2x32xf32>, vector<32x32xf32>, vector<2x32xf32> -> vector<2x32xf32>
      %c0_55 = arith.constant 0 : index
      %c0_56 = arith.constant 0 : index
      %c0_57 = arith.constant 0 : index
      %80 = vector.load %arg9[%c0_55, %c0_56, %c0_57] : memref<2x1x32xf32, #tpu.memory_space<vmem>>, vector<1x1x32xf32>
      %81 = vector.shape_cast %80 : vector<1x1x32xf32> to vector<1x32xf32>
      %82 = vector.broadcast %81 : vector<1x32xf32> to vector<2x32xf32>
      %83 = arith.addf %79, %82 : vector<2x32xf32>
      %84 = arith.addf %20, %83 : vector<2x32xf32>
      %c0_58 = arith.constant 0 : index
      %c0_59 = arith.constant 0 : index
      %c0_60 = arith.constant 0 : index
      %85 = vector.load %arg10[%c0_58, %c0_59, %c0_60] : memref<2x1x32xf32, #tpu.memory_space<vmem>>, vector<1x1x32xf32>
      %86 = vector.shape_cast %85 : vector<1x1x32xf32> to vector<1x32xf32>
      %c0_61 = arith.constant 0 : index
      %c0_62 = arith.constant 0 : index
      %c0_63 = arith.constant 0 : index
      %87 = vector.load %arg11[%c0_61, %c0_62, %c0_63] : memref<2x1x32xf32, #tpu.memory_space<vmem>>, vector<1x1x32xf32>
      %88 = vector.shape_cast %87 : vector<1x1x32xf32> to vector<1x32xf32>
      %cst_64 = arith.constant dense<0.000000e+00> : vector<2xf32>
      %89 = vector.multi_reduction <add>, %84, %cst_64 [1] : vector<2x32xf32> to vector<2xf32>
      %90 = vector.shape_cast %89 : vector<2xf32> to vector<2x1xf32>
      %cst_65 = arith.constant 3.200000e+01 : f32
      %91 = vector.broadcast %cst_65 : f32 to vector<2x1xf32>
      %92 = arith.divf %90, %91 : vector<2x1xf32>
      %93 = vector.broadcast %92 : vector<2x1xf32> to vector<2x32xf32>
      %94 = arith.subf %84, %93 : vector<2x32xf32>
      %95 = arith.mulf %94, %94 : vector<2x32xf32>
      %cst_66 = arith.constant dense<0.000000e+00> : vector<2xf32>
      %96 = vector.multi_reduction <add>, %95, %cst_66 [1] : vector<2x32xf32> to vector<2xf32>
      %97 = vector.shape_cast %96 : vector<2xf32> to vector<2x1xf32>
      %cst_67 = arith.constant 3.200000e+01 : f32
      %98 = vector.broadcast %cst_67 : f32 to vector<2x1xf32>
      %99 = arith.divf %97, %98 : vector<2x1xf32>
      %100 = vector.broadcast %92 : vector<2x1xf32> to vector<2x32xf32>
      %101 = arith.subf %84, %100 : vector<2x32xf32>
      %cst_68 = arith.constant 9.99999974E-6 : f32
      %102 = vector.broadcast %cst_68 : f32 to vector<2x1xf32>
      %103 = arith.addf %99, %102 : vector<2x1xf32>
      %104 = math.rsqrt %103 : vector<2x1xf32>
      %105 = vector.broadcast %104 : vector<2x1xf32> to vector<2x32xf32>
      %106 = arith.mulf %101, %105 : vector<2x32xf32>
      %107 = vector.broadcast %86 : vector<1x32xf32> to vector<2x32xf32>
      %108 = arith.mulf %106, %107 : vector<2x32xf32>
      %109 = vector.broadcast %88 : vector<1x32xf32> to vector<2x32xf32>
      %110 = arith.addf %108, %109 : vector<2x32xf32>
      %c0_69 = arith.constant 0 : index
      %c0_70 = arith.constant 0 : index
      %c0_71 = arith.constant 0 : index
      %111 = vector.load %arg14[%c0_69, %c0_70, %c0_71] : memref<2x32x64xf32, #tpu.memory_space<vmem>>, vector<1x32x64xf32>
      %112 = vector.shape_cast %111 : vector<1x32x64xf32> to vector<32x64xf32>
      %cst_72 = arith.constant dense<0.000000e+00> : vector<2x64xf32>
      %113 = tpu.matmul %110, %112, %cst_72 {dimension_numbers = #tpu.dot_dimension_numbers<[1], [0], [0], [1], [0, 0, 1, 1], [], []>} : vector<2x32xf32>, vector<32x64xf32>, vector<2x64xf32> -> vector<2x64xf32>
      %c0_73 = arith.constant 0 : index
      %c0_74 = arith.constant 0 : index
      %c0_75 = arith.constant 0 : index
      %114 = vector.load %arg15[%c0_73, %c0_74, %c0_75] : memref<2x1x64xf32, #tpu.memory_space<vmem>>, vector<1x1x64xf32>
      %115 = vector.shape_cast %114 : vector<1x1x64xf32> to vector<1x64xf32>
      %116 = vector.broadcast %115 : vector<1x64xf32> to vector<2x64xf32>
      %117 = arith.addf %113, %116 : vector<2x64xf32>
      %cst_76 = arith.constant 0.000000e+00 : f32
      %118 = vector.broadcast %cst_76 : f32 to vector<2x64xf32>
      %119 = arith.maximumf %117, %118 : vector<2x64xf32>
      %c0_77 = arith.constant 0 : index
      %c0_78 = arith.constant 0 : index
      %c0_79 = arith.constant 0 : index
      %120 = vector.load %arg16[%c0_77, %c0_78, %c0_79] : memref<2x64x32xf32, #tpu.memory_space<vmem>>, vector<1x64x32xf32>
      %121 = vector.shape_cast %120 : vector<1x64x32xf32> to vector<64x32xf32>
      %cst_80 = arith.constant dense<0.000000e+00> : vector<2x32xf32>
      %122 = tpu.matmul %119, %121, %cst_80 {dimension_numbers = #tpu.dot_dimension_numbers<[1], [0], [0], [1], [0, 0, 1, 1], [], []>} : vector<2x64xf32>, vector<64x32xf32>, vector<2x32xf32> -> vector<2x32xf32>
      %c0_81 = arith.constant 0 : index
      %c0_82 = arith.constant 0 : index
      %c0_83 = arith.constant 0 : index
      %123 = vector.load %arg17[%c0_81, %c0_82, %c0_83] : memref<2x1x32xf32, #tpu.memory_space<vmem>>, vector<1x1x32xf32>
      %124 = vector.shape_cast %123 : vector<1x1x32xf32> to vector<1x32xf32>
      %125 = vector.broadcast %124 : vector<1x32xf32> to vector<2x32xf32>
      %126 = arith.addf %122, %125 : vector<2x32xf32>
      %127 = arith.addf %110, %126 : vector<2x32xf32>
      %c0_84 = arith.constant 0 : index
      %c0_85 = arith.constant 0 : index
      %c0_86 = arith.constant 0 : index
      %128 = vector.load %arg12[%c0_84, %c0_85, %c0_86] : memref<2x1x32xf32, #tpu.memory_space<vmem>>, vector<1x1x32xf32>
      %129 = vector.shape_cast %128 : vector<1x1x32xf32> to vector<1x32xf32>
      %c0_87 = arith.constant 0 : index
      %c0_88 = arith.constant 0 : index
      %c0_89 = arith.constant 0 : index
      %130 = vector.load %arg13[%c0_87, %c0_88, %c0_89] : memref<2x1x32xf32, #tpu.memory_space<vmem>>, vector<1x1x32xf32>
      %131 = vector.shape_cast %130 : vector<1x1x32xf32> to vector<1x32xf32>
      %cst_90 = arith.constant dense<0.000000e+00> : vector<2xf32>
      %132 = vector.multi_reduction <add>, %127, %cst_90 [1] : vector<2x32xf32> to vector<2xf32>
      %133 = vector.shape_cast %132 : vector<2xf32> to vector<2x1xf32>
      %cst_91 = arith.constant 3.200000e+01 : f32
      %134 = vector.broadcast %cst_91 : f32 to vector<2x1xf32>
      %135 = arith.divf %133, %134 : vector<2x1xf32>
      %136 = vector.broadcast %135 : vector<2x1xf32> to vector<2x32xf32>
      %137 = arith.subf %127, %136 : vector<2x32xf32>
      %138 = arith.mulf %137, %137 : vector<2x32xf32>
      %cst_92 = arith.constant dense<0.000000e+00> : vector<2xf32>
      %139 = vector.multi_reduction <add>, %138, %cst_92 [1] : vector<2x32xf32> to vector<2xf32>
      %140 = vector.shape_cast %139 : vector<2xf32> to vector<2x1xf32>
      %cst_93 = arith.constant 3.200000e+01 : f32
      %141 = vector.broadcast %cst_93 : f32 to vector<2x1xf32>
      %142 = arith.divf %140, %141 : vector<2x1xf32>
      %143 = vector.broadcast %135 : vector<2x1xf32> to vector<2x32xf32>
      %144 = arith.subf %127, %143 : vector<2x32xf32>
      %cst_94 = arith.constant 9.99999974E-6 : f32
      %145 = vector.broadcast %cst_94 : f32 to vector<2x1xf32>
      %146 = arith.addf %142, %145 : vector<2x1xf32>
      %147 = math.rsqrt %146 : vector<2x1xf32>
      %148 = vector.broadcast %147 : vector<2x1xf32> to vector<2x32xf32>
      %149 = arith.mulf %144, %148 : vector<2x32xf32>
      %150 = vector.broadcast %129 : vector<1x32xf32> to vector<2x32xf32>
      %151 = arith.mulf %149, %150 : vector<2x32xf32>
      %152 = vector.broadcast %131 : vector<1x32xf32> to vector<2x32xf32>
      %153 = arith.addf %151, %152 : vector<2x32xf32>
      %c1 = arith.constant 1 : index
      %c0_95 = arith.constant 0 : index
      %c0_96 = arith.constant 0 : index
      %154 = vector.load %arg6[%c1, %c0_95, %c0_96] : memref<2x32x96xf32, #tpu.memory_space<vmem>>, vector<1x32x96xf32>
      %155 = vector.shape_cast %154 : vector<1x32x96xf32> to vector<32x96xf32>
      %cst_97 = arith.constant dense<0.000000e+00> : vector<2x96xf32>
      %156 = tpu.matmul %153, %155, %cst_97 {dimension_numbers = #tpu.dot_dimension_numbers<[1], [0], [0], [1], [0, 0, 1, 1], [], []>} : vector<2x32xf32>, vector<32x96xf32>, vector<2x96xf32> -> vector<2x96xf32>
      %c1_98 = arith.constant 1 : index
      %c0_99 = arith.constant 0 : index
      %c0_100 = arith.constant 0 : index
      %157 = vector.load %arg7[%c1_98, %c0_99, %c0_100] : memref<2x1x96xf32, #tpu.memory_space<vmem>>, vector<1x1x96xf32>
      %158 = vector.shape_cast %157 : vector<1x1x96xf32> to vector<1x96xf32>
      %159 = vector.broadcast %158 : vector<1x96xf32> to vector<2x96xf32>
      %160 = arith.addf %156, %159 : vector<2x96xf32>
      %161 = vector.extract_strided_slice %160 {offsets = [0, 0], sizes = [2, 32], strides = [1, 1]} : vector<2x96xf32> to vector<2x32xf32>
      %cst_101 = arith.constant 0.000000e+00 : f32
      %162 = vector.broadcast %cst_101 : f32 to vector<2x32xf32>
      %163 = arith.cmpf ogt, %161, %162 : vector<2x32xf32>
      %cst_102 = arith.constant 1.000000e+00 : f32
      %164 = vector.broadcast %cst_102 : f32 to vector<2x32xf32>
      %165 = arith.addf %161, %164 : vector<2x32xf32>
      %166 = math.exp %161 : vector<2x32xf32>
      %167 = arith.select %163, %165, %166 : vector<2x32xi1>, vector<2x32xf32>
      %168 = vector.extract_strided_slice %160 {offsets = [0, 32], sizes = [2, 32], strides = [1, 1]} : vector<2x96xf32> to vector<2x32xf32>
      %cst_103 = arith.constant 0.000000e+00 : f32
      %169 = vector.broadcast %cst_103 : f32 to vector<2x32xf32>
      %170 = arith.cmpf ogt, %168, %169 : vector<2x32xf32>
      %cst_104 = arith.constant 1.000000e+00 : f32
      %171 = vector.broadcast %cst_104 : f32 to vector<2x32xf32>
      %172 = arith.addf %168, %171 : vector<2x32xf32>
      %173 = math.exp %168 : vector<2x32xf32>
      %174 = arith.select %170, %172, %173 : vector<2x32xi1>, vector<2x32xf32>
      %175 = vector.extract_strided_slice %160 {offsets = [0, 64], sizes = [2, 32], strides = [1, 1]} : vector<2x96xf32> to vector<2x32xf32>
      %c1_105 = arith.constant 1 : index
      %c0_106 = arith.constant 0 : index
      %c0_107 = arith.constant 0 : index
      %c0_108 = arith.constant 0 : index
      %176 = vector.load %arg21[%c1_105, %c0_106, %c0_107, %c0_108] : memref<2x2x32x32xf32, #tpu.memory_space<vmem>>, vector<1x2x32x32xf32>
      %177 = vector.shape_cast %176 : vector<1x2x32x32xf32> to vector<2x32x32xf32>
      %178 = vector.shape_cast %174 : vector<2x32xf32> to vector<2x32x1xf32>
      %179 = vector.shape_cast %175 : vector<2x32xf32> to vector<2x1x32xf32>
      %180 = vector.broadcast %178 : vector<2x32x1xf32> to vector<2x32x32xf32>
      %181 = vector.broadcast %179 : vector<2x1x32xf32> to vector<2x32x32xf32>
      %182 = arith.mulf %180, %181 : vector<2x32x32xf32>
      %183 = vector.shape_cast %5 : vector<32x32xf32> to vector<1x32x32xf32>
      %184 = vector.broadcast %183 : vector<1x32x32xf32> to vector<2x32x32xf32>
      %185 = arith.mulf %182, %184 : vector<2x32x32xf32>
      %186 = arith.addf %177, %185 : vector<2x32x32xf32>
      %c1_109 = arith.constant 1 : index
      %c0_110 = arith.constant 0 : index
      %c0_111 = arith.constant 0 : index
      %187 = vector.load %arg22[%c1_109, %c0_110, %c0_111] : memref<2x2x32xf32, #tpu.memory_space<vmem>>, vector<1x2x32xf32>
      %188 = vector.shape_cast %187 : vector<1x2x32xf32> to vector<2x32xf32>
      %189 = arith.addf %188, %174 : vector<2x32xf32>
      %c1_112 = arith.constant 1 : index
      %c0_113 = arith.constant 0 : index
      %c0_114 = arith.constant 0 : index
      %c0_115 = arith.constant 0 : index
      %190 = vector.load %arg21[%c1_112, %c0_113, %c0_114, %c0_115] : memref<2x2x32x32xf32, #tpu.memory_space<vmem>>, vector<1x2x32x32xf32>
      %191 = vector.shape_cast %190 : vector<1x2x32x32xf32> to vector<2x32x32xf32>
      %192 = vector.shape_cast %186 : vector<2x32x32xf32> to vector<1x2x32x32xf32>
      tpu.vector_store %arg21[%c1_112, %c0_113, %c0_114, %c0_115], %192 {strides = array<i32>} : memref<2x2x32x32xf32, #tpu.memory_space<vmem>>, vector<1x2x32x32xf32>,
      %c1_116 = arith.constant 1 : index
      %c0_117 = arith.constant 0 : index
      %c0_118 = arith.constant 0 : index
      %193 = vector.load %arg22[%c1_116, %c0_117, %c0_118] : memref<2x2x32xf32, #tpu.memory_space<vmem>>, vector<1x2x32xf32>
      %194 = vector.shape_cast %193 : vector<1x2x32xf32> to vector<2x32xf32>
      %195 = vector.shape_cast %189 : vector<2x32xf32> to vector<1x2x32xf32>
      tpu.vector_store %arg22[%c1_116, %c0_117, %c0_118], %195 {strides = array<i32>} : memref<2x2x32xf32, #tpu.memory_space<vmem>>, vector<1x2x32xf32>,
      %196 = vector.shape_cast %167 : vector<2x32xf32> to vector<2x32x1xf32>
      %197 = vector.broadcast %196 : vector<2x32x1xf32> to vector<2x32x32xf32>
      %198 = arith.mulf %197, %186 : vector<2x32x32xf32>
      %cst_119 = arith.constant dense<0.000000e+00> : vector<2x32xf32>
      %199 = vector.multi_reduction <add>, %198, %cst_119 [1] : vector<2x32x32xf32> to vector<2x32xf32>
      %200 = arith.mulf %167, %189 : vector<2x32xf32>
      %cst_120 = arith.constant dense<0.000000e+00> : vector<2x32xf32>
      %201 = tpu.matmul %200, %5, %cst_120 {dimension_numbers = #tpu.dot_dimension_numbers<[1], [0], [0], [1], [0, 0, 1, 1], [], []>} : vector<2x32xf32>, vector<32x32xf32>, vector<2x32xf32> -> vector<2x32xf32>
      %cst_121 = arith.constant 9.99999997E-7 : f32
      %202 = vector.broadcast %cst_121 : f32 to vector<2x32xf32>
      %203 = arith.addf %201, %202 : vector<2x32xf32>
      %204 = tpu.reciprocal %203 {approx = true} : vector<2x32xf32> -> vector<2x32xf32>
      %205 = arith.mulf %203, %204 : vector<2x32xf32>
      %cst_122 = arith.constant 2.000000e+00 : f32
      %206 = vector.broadcast %cst_122 : f32 to vector<2x32xf32>
      %207 = arith.subf %206, %205 : vector<2x32xf32>
      %208 = arith.mulf %204, %207 : vector<2x32xf32>
      %209 = arith.mulf %199, %208 : vector<2x32xf32>
      %c1_123 = arith.constant 1 : index
      %c0_124 = arith.constant 0 : index
      %c0_125 = arith.constant 0 : index
      %210 = vector.load %arg8[%c1_123, %c0_124, %c0_125] : memref<2x32x32xf32, #tpu.memory_space<vmem>>, vector<1x32x32xf32>
      %211 = vector.shape_cast %210 : vector<1x32x32xf32> to vector<32x32xf32>
      %cst_126 = arith.constant dense<0.000000e+00> : vector<2x32xf32>
      %212 = tpu.matmul %209, %211, %cst_126 {dimension_numbers = #tpu.dot_dimension_numbers<[1], [0], [0], [1], [0, 0, 1, 1], [], []>} : vector<2x32xf32>, vector<32x32xf32>, vector<2x32xf32> -> vector<2x32xf32>
      %c1_127 = arith.constant 1 : index
      %c0_128 = arith.constant 0 : index
      %c0_129 = arith.constant 0 : index
      %213 = vector.load %arg9[%c1_127, %c0_128, %c0_129] : memref<2x1x32xf32, #tpu.memory_space<vmem>>, vector<1x1x32xf32>
      %214 = vector.shape_cast %213 : vector<1x1x32xf32> to vector<1x32xf32>
      %215 = vector.broadcast %214 : vector<1x32xf32> to vector<2x32xf32>
      %216 = arith.addf %212, %215 : vector<2x32xf32>
      %217 = arith.addf %153, %216 : vector<2x32xf32>
      %c1_130 = arith.constant 1 : index
      %c0_131 = arith.constant 0 : index
      %c0_132 = arith.constant 0 : index
      %218 = vector.load %arg10[%c1_130, %c0_131, %c0_132] : memref<2x1x32xf32, #tpu.memory_space<vmem>>, vector<1x1x32xf32>
      %219 = vector.shape_cast %218 : vector<1x1x32xf32> to vector<1x32xf32>
      %c1_133 = arith.constant 1 : index
      %c0_134 = arith.constant 0 : index
      %c0_135 = arith.constant 0 : index
      %220 = vector.load %arg11[%c1_133, %c0_134, %c0_135] : memref<2x1x32xf32, #tpu.memory_space<vmem>>, vector<1x1x32xf32>
      %221 = vector.shape_cast %220 : vector<1x1x32xf32> to vector<1x32xf32>
      %cst_136 = arith.constant dense<0.000000e+00> : vector<2xf32>
      %222 = vector.multi_reduction <add>, %217, %cst_136 [1] : vector<2x32xf32> to vector<2xf32>
      %223 = vector.shape_cast %222 : vector<2xf32> to vector<2x1xf32>
      %cst_137 = arith.constant 3.200000e+01 : f32
      %224 = vector.broadcast %cst_137 : f32 to vector<2x1xf32>
      %225 = arith.divf %223, %224 : vector<2x1xf32>
      %226 = vector.broadcast %225 : vector<2x1xf32> to vector<2x32xf32>
      %227 = arith.subf %217, %226 : vector<2x32xf32>
      %228 = arith.mulf %227, %227 : vector<2x32xf32>
      %cst_138 = arith.constant dense<0.000000e+00> : vector<2xf32>
      %229 = vector.multi_reduction <add>, %228, %cst_138 [1] : vector<2x32xf32> to vector<2xf32>
      %230 = vector.shape_cast %229 : vector<2xf32> to vector<2x1xf32>
      %cst_139 = arith.constant 3.200000e+01 : f32
      %231 = vector.broadcast %cst_139 : f32 to vector<2x1xf32>
      %232 = arith.divf %230, %231 : vector<2x1xf32>
      %233 = vector.broadcast %225 : vector<2x1xf32> to vector<2x32xf32>
      %234 = arith.subf %217, %233 : vector<2x32xf32>
      %cst_140 = arith.constant 9.99999974E-6 : f32
      %235 = vector.broadcast %cst_140 : f32 to vector<2x1xf32>
      %236 = arith.addf %232, %235 : vector<2x1xf32>
      %237 = math.rsqrt %236 : vector<2x1xf32>
      %238 = vector.broadcast %237 : vector<2x1xf32> to vector<2x32xf32>
      %239 = arith.mulf %234, %238 : vector<2x32xf32>
      %240 = vector.broadcast %219 : vector<1x32xf32> to vector<2x32xf32>
      %241 = arith.mulf %239, %240 : vector<2x32xf32>
      %242 = vector.broadcast %221 : vector<1x32xf32> to vector<2x32xf32>
      %243 = arith.addf %241, %242 : vector<2x32xf32>
      %c1_141 = arith.constant 1 : index
      %c0_142 = arith.constant 0 : index
      %c0_143 = arith.constant 0 : index
      %244 = vector.load %arg14[%c1_141, %c0_142, %c0_143] : memref<2x32x64xf32, #tpu.memory_space<vmem>>, vector<1x32x64xf32>
      %245 = vector.shape_cast %244 : vector<1x32x64xf32> to vector<32x64xf32>
      %cst_144 = arith.constant dense<0.000000e+00> : vector<2x64xf32>
      %246 = tpu.matmul %243, %245, %cst_144 {dimension_numbers = #tpu.dot_dimension_numbers<[1], [0], [0], [1], [0, 0, 1, 1], [], []>} : vector<2x32xf32>, vector<32x64xf32>, vector<2x64xf32> -> vector<2x64xf32>
      %c1_145 = arith.constant 1 : index
      %c0_146 = arith.constant 0 : index
      %c0_147 = arith.constant 0 : index
      %247 = vector.load %arg15[%c1_145, %c0_146, %c0_147] : memref<2x1x64xf32, #tpu.memory_space<vmem>>, vector<1x1x64xf32>
      %248 = vector.shape_cast %247 : vector<1x1x64xf32> to vector<1x64xf32>
      %249 = vector.broadcast %248 : vector<1x64xf32> to vector<2x64xf32>
      %250 = arith.addf %246, %249 : vector<2x64xf32>
      %cst_148 = arith.constant 0.000000e+00 : f32
      %251 = vector.broadcast %cst_148 : f32 to vector<2x64xf32>
      %252 = arith.maximumf %250, %251 : vector<2x64xf32>
      %c1_149 = arith.constant 1 : index
      %c0_150 = arith.constant 0 : index
      %c0_151 = arith.constant 0 : index
      %253 = vector.load %arg16[%c1_149, %c0_150, %c0_151] : memref<2x64x32xf32, #tpu.memory_space<vmem>>, vector<1x64x32xf32>
      %254 = vector.shape_cast %253 : vector<1x64x32xf32> to vector<64x32xf32>
      %cst_152 = arith.constant dense<0.000000e+00> : vector<2x32xf32>
      %255 = tpu.matmul %252, %254, %cst_152 {dimension_numbers = #tpu.dot_dimension_numbers<[1], [0], [0], [1], [0, 0, 1, 1], [], []>} : vector<2x64xf32>, vector<64x32xf32>, vector<2x32xf32> -> vector<2x32xf32>
      %c1_153 = arith.constant 1 : index
      %c0_154 = arith.constant 0 : index
      %c0_155 = arith.constant 0 : index
      %256 = vector.load %arg17[%c1_153, %c0_154, %c0_155] : memref<2x1x32xf32, #tpu.memory_space<vmem>>, vector<1x1x32xf32>
      %257 = vector.shape_cast %256 : vector<1x1x32xf32> to vector<1x32xf32>
      %258 = vector.broadcast %257 : vector<1x32xf32> to vector<2x32xf32>
      %259 = arith.addf %255, %258 : vector<2x32xf32>
      %260 = arith.addf %243, %259 : vector<2x32xf32>
      %c1_156 = arith.constant 1 : index
      %c0_157 = arith.constant 0 : index
      %c0_158 = arith.constant 0 : index
      %261 = vector.load %arg12[%c1_156, %c0_157, %c0_158] : memref<2x1x32xf32, #tpu.memory_space<vmem>>, vector<1x1x32xf32>
      %262 = vector.shape_cast %261 : vector<1x1x32xf32> to vector<1x32xf32>
      %c1_159 = arith.constant 1 : index
      %c0_160 = arith.constant 0 : index
      %c0_161 = arith.constant 0 : index
      %263 = vector.load %arg13[%c1_159, %c0_160, %c0_161] : memref<2x1x32xf32, #tpu.memory_space<vmem>>, vector<1x1x32xf32>
      %264 = vector.shape_cast %263 : vector<1x1x32xf32> to vector<1x32xf32>
      %cst_162 = arith.constant dense<0.000000e+00> : vector<2xf32>
      %265 = vector.multi_reduction <add>, %260, %cst_162 [1] : vector<2x32xf32> to vector<2xf32>
      %266 = vector.shape_cast %265 : vector<2xf32> to vector<2x1xf32>
      %cst_163 = arith.constant 3.200000e+01 : f32
      %267 = vector.broadcast %cst_163 : f32 to vector<2x1xf32>
      %268 = arith.divf %266, %267 : vector<2x1xf32>
      %269 = vector.broadcast %268 : vector<2x1xf32> to vector<2x32xf32>
      %270 = arith.subf %260, %269 : vector<2x32xf32>
      %271 = arith.mulf %270, %270 : vector<2x32xf32>
      %cst_164 = arith.constant dense<0.000000e+00> : vector<2xf32>
      %272 = vector.multi_reduction <add>, %271, %cst_164 [1] : vector<2x32xf32> to vector<2xf32>
      %273 = vector.shape_cast %272 : vector<2xf32> to vector<2x1xf32>
      %cst_165 = arith.constant 3.200000e+01 : f32
      %274 = vector.broadcast %cst_165 : f32 to vector<2x1xf32>
      %275 = arith.divf %273, %274 : vector<2x1xf32>
      %276 = vector.broadcast %268 : vector<2x1xf32> to vector<2x32xf32>
      %277 = arith.subf %260, %276 : vector<2x32xf32>
      %cst_166 = arith.constant 9.99999974E-6 : f32
      %278 = vector.broadcast %cst_166 : f32 to vector<2x1xf32>
      %279 = arith.addf %275, %278 : vector<2x1xf32>
      %280 = math.rsqrt %279 : vector<2x1xf32>
      %281 = vector.broadcast %280 : vector<2x1xf32> to vector<2x32xf32>
      %282 = arith.mulf %277, %281 : vector<2x32xf32>
      %283 = vector.broadcast %262 : vector<1x32xf32> to vector<2x32xf32>
      %284 = arith.mulf %282, %283 : vector<2x32xf32>
      %285 = vector.broadcast %264 : vector<1x32xf32> to vector<2x32xf32>
      %286 = arith.addf %284, %285 : vector<2x32xf32>
      %c0_167 = arith.constant 0 : index
      %c0_168 = arith.constant 0 : index
      %287 = vector.load %arg18[%c0_167, %c0_168] : memref<1x32xf32, #tpu.memory_space<vmem>>, vector<1x32xf32>
      %c0_169 = arith.constant 0 : index
      %c0_170 = arith.constant 0 : index
      %288 = vector.load %arg19[%c0_169, %c0_170] : memref<1x32xf32, #tpu.memory_space<vmem>>, vector<1x32xf32>
      %cst_171 = arith.constant dense<0.000000e+00> : vector<2xf32>
      %289 = vector.multi_reduction <add>, %286, %cst_171 [1] : vector<2x32xf32> to vector<2xf32>
      %290 = vector.shape_cast %289 : vector<2xf32> to vector<2x1xf32>
      %cst_172 = arith.constant 3.200000e+01 : f32
      %291 = vector.broadcast %cst_172 : f32 to vector<2x1xf32>
      %292 = arith.divf %290, %291 : vector<2x1xf32>
      %293 = vector.broadcast %292 : vector<2x1xf32> to vector<2x32xf32>
      %294 = arith.subf %286, %293 : vector<2x32xf32>
      %295 = arith.mulf %294, %294 : vector<2x32xf32>
      %cst_173 = arith.constant dense<0.000000e+00> : vector<2xf32>
      %296 = vector.multi_reduction <add>, %295, %cst_173 [1] : vector<2x32xf32> to vector<2xf32>
      %297 = vector.shape_cast %296 : vector<2xf32> to vector<2x1xf32>
      %cst_174 = arith.constant 3.200000e+01 : f32
      %298 = vector.broadcast %cst_174 : f32 to vector<2x1xf32>
      %299 = arith.divf %297, %298 : vector<2x1xf32>
      %300 = vector.broadcast %292 : vector<2x1xf32> to vector<2x32xf32>
      %301 = arith.subf %286, %300 : vector<2x32xf32>
      %cst_175 = arith.constant 9.99999974E-6 : f32
      %302 = vector.broadcast %cst_175 : f32 to vector<2x1xf32>
      %303 = arith.addf %299, %302 : vector<2x1xf32>
      %304 = math.rsqrt %303 : vector<2x1xf32>
      %305 = vector.broadcast %304 : vector<2x1xf32> to vector<2x32xf32>
      %306 = arith.mulf %301, %305 : vector<2x32xf32>
      %307 = vector.broadcast %287 : vector<1x32xf32> to vector<2x32xf32>
      %308 = arith.mulf %306, %307 : vector<2x32xf32>
      %309 = vector.broadcast %288 : vector<1x32xf32> to vector<2x32xf32>
      %310 = arith.addf %308, %309 : vector<2x32xf32>
      %311 = arith.index_cast %arg23 : i32 to index
      %c0_176 = arith.constant 0 : index
      %c0_177 = arith.constant 0 : index
      %312 = vector.load %arg20[%311, %c0_176, %c0_177] : memref<16x2x32xf32, #tpu.memory_space<vmem>>, vector<1x2x32xf32>
      %313 = vector.shape_cast %312 : vector<1x2x32xf32> to vector<2x32xf32>
      %314 = vector.shape_cast %310 : vector<2x32xf32> to vector<1x2x32xf32>
      tpu.vector_store %arg20[%311, %c0_176, %c0_177], %314 {strides = array<i32>} : memref<16x2x32xf32, #tpu.memory_space<vmem>>, vector<1x2x32xf32>,
    }
    %c16_i32_17 = arith.constant 16 : i32
    return
  }
}

</mosaic_0001>

<llo_original>
// kernel: tpu_custom_call.1
$region0: #{tpu_custom_call.1}
  #allocation0 [shape = 'u32[]', space=smem, size = 0x4, offset = 0x4, fixed_abs, tag = 'smem constant byte address 0x4 - core index']
  #allocation1 [shape = 'u32[144,128]{1,0:T(1,128)}', space=vmem, size = 0x12000, scoped, tag = 'internal scratch']
  %s0 = inlined_call_operand.vmem [shape: s32[16,2,1], index: 0, kind: input, shape index: {}]
  %s1 = inlined_call_operand.hbm [shape: f32[2,2,32,32], index: 1, kind: input, shape index: {}, may-alias: {1,21}]
  %s2 = inlined_call_operand.hbm [shape: f32[2,2,32], index: 2, kind: input, shape index: {}, may-alias: {2,22}]
  %s3 = inlined_call_operand.vmem [shape: f32[56,32], index: 3, kind: input, shape index: {}]
  %s4 = inlined_call_operand.vmem [shape: f32[16,1,32], index: 4, kind: input, shape index: {}]
  %s5 = inlined_call_operand.vmem [shape: f32[32,32], index: 5, kind: input, shape index: {}]
  %s6 = inlined_call_operand.vmem [shape: f32[2,32,96], index: 6, kind: input, shape index: {}]
  %s7 = inlined_call_operand.vmem [shape: f32[2,1,96], index: 7, kind: input, shape index: {}]
  %s8 = inlined_call_operand.vmem [shape: f32[2,32,32], index: 8, kind: input, shape index: {}]
  %s9 = inlined_call_operand.vmem [shape: f32[2,1,32], index: 9, kind: input, shape index: {}]
  %s10 = inlined_call_operand.vmem [shape: f32[2,1,32], index: 10, kind: input, shape index: {}]
  %s11 = inlined_call_operand.vmem [shape: f32[2,1,32], index: 11, kind: input, shape index: {}]
  %s12 = inlined_call_operand.vmem [shape: f32[2,1,32], index: 12, kind: input, shape index: {}]
  %s13 = inlined_call_operand.vmem [shape: f32[2,1,32], index: 13, kind: input, shape index: {}]
  %s14 = inlined_call_operand.vmem [shape: f32[2,32,64], index: 14, kind: input, shape index: {}]
  %s15 = inlined_call_operand.vmem [shape: f32[2,1,64], index: 15, kind: input, shape index: {}]
  %s16 = inlined_call_operand.vmem [shape: f32[2,64,32], index: 16, kind: input, shape index: {}]
  %s17 = inlined_call_operand.vmem [shape: f32[2,1,32], index: 17, kind: input, shape index: {}]
  %s18 = inlined_call_operand.vmem [shape: f32[1,32], index: 18, kind: input, shape index: {}]
  %s19 = inlined_call_operand.vmem [shape: f32[1,32], index: 19, kind: input, shape index: {}]
  %s20 = inlined_call_operand.hbm [shape: f32[16,2,32], index: 20, kind: output, shape index: {0}]
  %s21 = inlined_call_operand.hbm [shape: f32[2,2,32,32], index: 21, kind: output, shape index: {1}, may-alias: {1,21}]
  %s22 = inlined_call_operand.hbm [shape: f32[2,2,32], index: 22, kind: output, shape index: {2}, may-alias: {2,22}]
  %23 = xla_tuple %s20, %s21, %s22
  %s24 = sld [smem:[#allocation0]]
  $region121: #{tpu_custom_call.1} parent=0
    _
  %s26 = ssub.s32 1, %s24
  %s27 = scalar_select 0, %s26, %s24
  $region1: #{tpu_custom_call.1} parent=0
    #allocation2 [shape = 'u8[65536]{0}', space=vmem, size = 0x10000, scoped, tag = 'input window, operand 1, single buffered']
    #allocation3 [shape = 's32[1]{0}', space=sflag, size = 0x4, scoped, tag = 'scoped memory for tpu_custom_call.1']
    #allocation4 [shape = 's32[1]{0}', space=sflag, size = 0x4, scoped, tag = 'scoped memory for tpu_custom_call.1']
    #allocation5 [shape = 'u8[2048]{0}', space=vmem, size = 0x800, scoped, tag = 'input window, operand 2, single buffered']
    #allocation6 [shape = 's32[1]{0}', space=sflag, size = 0x4, scoped, tag = 'scoped memory for tpu_custom_call.1']
    #allocation7 [shape = 'u8[16384]{0}', space=vmem, size = 0x4000, scoped, tag = 'output window, operand 0, single buffered']
    #allocation8 [shape = 'u8[65536]{0}', space=vmem, size = 0x10000, scoped, tag = 'output window, operand 1, single buffered']
    #allocation9 [shape = 's32[1]{0}', space=sflag, size = 0x4, scoped, tag = 'scoped memory for tpu_custom_call.1']
    #allocation10 [shape = 'u8[2048]{0}', space=vmem, size = 0x800, scoped, tag = 'output window, operand 2, single buffered']
    %28 = vsyncpa [#allocation3], 0
    %29 = vsyncpa [#allocation6], 0
    %30 = vsyncpa [#allocation4], 0
    %31 = vsyncpa [#allocation9], 0
    // Predicated region
    $region2: #{tpu_custom_call.1} parent=1 // pred_check
      _
    $region3: #{tpu_custom_call.1} parent=1 // pred_check_branch
      %33 = sbr.rel (0) target = $region5
    $region4: #{tpu_custom_call.1} parent=1 // pred_region
      _
    $region5: #{tpu_custom_call.1} parent=1 // pred_fallthru
      _
    // Predicated region
    $region6: #{tpu_custom_call.1} parent=1 // pred_check
      _
    $region7: #{tpu_custom_call.1} parent=1 // pred_check_branch
      %35 = sbr.rel (0) target = $region9
    $region8: #{tpu_custom_call.1} parent=1 // pred_region
      %s37 = ssub.s32 2048, 2048
      %38 = vsyncadd [#allocation3], %s37
      %s39 = sshll.u32 [#allocation2], 4
      %s40 = int_to_ptr.vmem [resolvable:$true] %s39
      %45 = dma.hbm_to_vmem [thread:$0]  %s1, 2048, %s40, [#allocation3], 128, 128, 8
    $region9: #{tpu_custom_call.1} parent=1 // pred_fallthru
      _
    // Predicated region
    $region10: #{tpu_custom_call.1} parent=1 // pred_check
      _
    $region11: #{tpu_custom_call.1} parent=1 // pred_check_branch
      %47 = sbr.rel (0) target = $region13
    $region12: #{tpu_custom_call.1} parent=1 // pred_region
      %s49 = ssub.s32 64, 64
      %50 = vsyncadd [#allocation6], %s49
      %s51 = sshll.u32 [#allocation5], 4
      %s52 = int_to_ptr.vmem [resolvable:$true] %s51
      %57 = dma.hbm_to_vmem [thread:$0]  %s2, 64, %s52, [#allocation6], 32, 32, 2
    $region13: #{tpu_custom_call.1} parent=1 // pred_fallthru
      _
    // Predicated region
    $region14: #{tpu_custom_call.1} parent=1 // pred_check
      _
    $region15: #{tpu_custom_call.1} parent=1 // pred_check_branch
      %59 = sbr.rel (0) target = $region17
    $region16: #{tpu_custom_call.1} parent=1 // pred_region
      _
    $region17: #{tpu_custom_call.1} parent=1 // pred_fallthru
      _
    // Predicated region
    $region18: #{tpu_custom_call.1} parent=1 // pred_check
      _
    $region19: #{tpu_custom_call.1} parent=1 // pred_check_branch
      %61 = sbr.rel (0) target = $region21
    $region20: #{tpu_custom_call.1} parent=1 // pred_region
      _
    $region21: #{tpu_custom_call.1} parent=1 // pred_fallthru
      _
    // Predicated region
    $region22: #{tpu_custom_call.1} parent=1 // pred_check
      _
    $region23: #{tpu_custom_call.1} parent=1 // pred_check_branch
      %63 = sbr.rel (0) target = $region25
    $region24: #{tpu_custom_call.1} parent=1 // pred_region
      _
    $region25: #{tpu_custom_call.1} parent=1 // pred_fallthru
      _
    // Predicated region
    $region26: #{tpu_custom_call.1} parent=1 // pred_check
      _
    $region27: #{tpu_custom_call.1} parent=1 // pred_check_branch
      %65 = sbr.rel (0) target = $region29
    $region28: #{tpu_custom_call.1} parent=1 // pred_region
      _
    $region29: #{tpu_custom_call.1} parent=1 // pred_fallthru
      _
    // Predicated region
    $region30: #{tpu_custom_call.1} parent=1 // pred_check
      _
    $region31: #{tpu_custom_call.1} parent=1 // pred_check_branch
      %67 = sbr.rel (0) target = $region33
    $region32: #{tpu_custom_call.1} parent=1 // pred_region
      _
    $region33: #{tpu_custom_call.1} parent=1 // pred_fallthru
      _
    // Predicated region
    $region34: #{tpu_custom_call.1} parent=1 // pred_check
      _
    $region35: #{tpu_custom_call.1} parent=1 // pred_check_branch
      %69 = sbr.rel (0) target = $region37
    $region36: #{tpu_custom_call.1} parent=1 // pred_region
      _
    $region37: #{tpu_custom_call.1} parent=1 // pred_fallthru
      _
    // Predicated region
    $region38: #{tpu_custom_call.1} parent=1 // pred_check
      _
    $region39: #{tpu_custom_call.1} parent=1 // pred_check_branch
      %71 = sbr.rel (0) target = $region41
    $region40: #{tpu_custom_call.1} parent=1 // pred_region
      _
    $region41: #{tpu_custom_call.1} parent=1 // pred_fallthru
      _
    // Predicated region
    $region42: #{tpu_custom_call.1} parent=1 // pred_check
      _
    $region43: #{tpu_custom_call.1} parent=1 // pred_check_branch
      %73 = sbr.rel (0) target = $region45
    $region44: #{tpu_custom_call.1} parent=1 // pred_region
      _
    $region45: #{tpu_custom_call.1} parent=1 // pred_fallthru
      _
    // Predicated region
    $region46: #{tpu_custom_call.1} parent=1 // pred_check
      _
    $region47: #{tpu_custom_call.1} parent=1 // pred_check_branch
      %75 = sbr.rel (0) target = $region49
    $region48: #{tpu_custom_call.1} parent=1 // pred_region
      _
    $region49: #{tpu_custom_call.1} parent=1 // pred_fallthru
      _
    // Predicated region
    $region50: #{tpu_custom_call.1} parent=1 // pred_check
      _
    $region51: #{tpu_custom_call.1} parent=1 // pred_check_branch
      %77 = sbr.rel (0) target = $region53
    $region52: #{tpu_custom_call.1} parent=1 // pred_region
      _
    $region53: #{tpu_custom_call.1} parent=1 // pred_fallthru
      _
    // Predicated region
    $region54: #{tpu_custom_call.1} parent=1 // pred_check
      _
    $region55: #{tpu_custom_call.1} parent=1 // pred_check_branch
      %79 = sbr.rel (0) target = $region57
    $region56: #{tpu_custom_call.1} parent=1 // pred_region
      _
    $region57: #{tpu_custom_call.1} parent=1 // pred_fallthru
      _
    // Predicated region
    $region58: #{tpu_custom_call.1} parent=1 // pred_check
      _
    $region59: #{tpu_custom_call.1} parent=1 // pred_check_branch
      %81 = sbr.rel (0) target = $region61
    $region60: #{tpu_custom_call.1} parent=1 // pred_region
      _
    $region61: #{tpu_custom_call.1} parent=1 // pred_fallthru
      _
    // Predicated region
    $region62: #{tpu_custom_call.1} parent=1 // pred_check
      _
    $region63: #{tpu_custom_call.1} parent=1 // pred_check_branch
      %83 = sbr.rel (0) target = $region65
    $region64: #{tpu_custom_call.1} parent=1 // pred_region
      _
    $region65: #{tpu_custom_call.1} parent=1 // pred_fallthru
      _
    // Predicated region
    $region66: #{tpu_custom_call.1} parent=1 // pred_check
      _
    $region67: #{tpu_custom_call.1} parent=1 // pred_check_branch
      %85 = sbr.rel (0) target = $region69
    $region68: #{tpu_custom_call.1} parent=1 // pred_region
      _
    $region69: #{tpu_custom_call.1} parent=1 // pred_fallthru
      _
    // Predicated region
    $region70: #{tpu_custom_call.1} parent=1 // pred_check
      _
    $region71: #{tpu_custom_call.1} parent=1 // pred_check_branch
      %87 = sbr.rel (0) target = $region73
    $region72: #{tpu_custom_call.1} parent=1 // pred_region
      _
    $region73: #{tpu_custom_call.1} parent=1 // pred_fallthru
      _
    // Predicated region
    $region74: #{tpu_custom_call.1} parent=1 // pred_check
      _
    $region75: #{tpu_custom_call.1} parent=1 // pred_check_branch
      %89 = sbr.rel (0) target = $region77
    $region76: #{tpu_custom_call.1} parent=1 // pred_region
      _
    $region77: #{tpu_custom_call.1} parent=1 // pred_fallthru
      _
    // Predicated region
    $region78: #{tpu_custom_call.1} parent=1 // pred_check
      _
    $region79: #{tpu_custom_call.1} parent=1 // pred_check_branch
      %91 = sbr.rel (0) target = $region81
    $region80: #{tpu_custom_call.1} parent=1 // pred_region
      _
    $region81: #{tpu_custom_call.1} parent=1 // pred_fallthru
      _
    // Predicated region
    $region82: #{tpu_custom_call.1} parent=1 // pred_check
      _
    $region83: #{tpu_custom_call.1} parent=1 // pred_check_branch
      %93 = sbr.rel (0) target = $region85
    $region84: #{tpu_custom_call.1} parent=1 // pred_region
      %94 = dma.done [#allocation3], 2048
    $region85: #{tpu_custom_call.1} parent=1 // pred_fallthru
      _
    // Predicated region
    $region86: #{tpu_custom_call.1} parent=1 // pred_check
      _
    $region87: #{tpu_custom_call.1} parent=1 // pred_check_branch
      %96 = sbr.rel (0) target = $region89
    $region88: #{tpu_custom_call.1} parent=1 // pred_region
      %97 = dma.done [#allocation6], 64
    $region89: #{tpu_custom_call.1} parent=1 // pred_fallthru
      _
    %v98 = vld [vmem:[#allocation2] sm:$0xff]
    %v99 = vld [vmem:[#allocation2 + $0x8] sm:$0xff]
    %v100 = vld [vmem:[#allocation2 + $0x10] sm:$0xff]
    %v101 = vld [vmem:[#allocation2 + $0x18] sm:$0xff]
    %v102 = vld [vmem:[#allocation2 + $0x20] sm:$0xff]
    %v103 = vld [vmem:[#allocation2 + $0x28] sm:$0xff]
    %v104 = vld [vmem:[#allocation2 + $0x30] sm:$0xff]
    %v105 = vld [vmem:[#allocation2 + $0x38] sm:$0xff]
    %v106 = vld [vmem:[#allocation2 + $0x40] sm:$0xff]
    %v107 = vld [vmem:[#allocation2 + $0x48] sm:$0xff]
    %v108 = vld [vmem:[#allocation2 + $0x50] sm:$0xff]
    %v109 = vld [vmem:[#allocation2 + $0x58] sm:$0xff]
    %v110 = vld [vmem:[#allocation2 + $0x60] sm:$0xff]
    %v111 = vld [vmem:[#allocation2 + $0x68] sm:$0xff]
    %v112 = vld [vmem:[#allocation2 + $0x70] sm:$0xff]
    %v113 = vld [vmem:[#allocation2 + $0x78] sm:$0xff]
    %vm114 = vcmask 261120
    %115 = vst.msk [vmem:[#allocation8] sm:$0xff] %vm114, %v98
    %116 = vst.msk [vmem:[#allocation8 + $0x8] sm:$0xff] %vm114, %v99
    %117 = vst.msk [vmem:[#allocation8 + $0x10] sm:$0xff] %vm114, %v100
    %118 = vst.msk [vmem:[#allocation8 + $0x18] sm:$0xff] %vm114, %v101
    %119 = vst.msk [vmem:[#allocation8 + $0x20] sm:$0xff] %vm114, %v102
    %120 = vst.msk [vmem:[#allocation8 + $0x28] sm:$0xff] %vm114, %v103
    %121 = vst.msk [vmem:[#allocation8 + $0x30] sm:$0xff] %vm114, %v104
    %122 = vst.msk [vmem:[#allocation8 + $0x38] sm:$0xff] %vm114, %v105
    %123 = vst.msk [vmem:[#allocation8 + $0x40] sm:$0xff] %vm114, %v106
    %124 = vst.msk [vmem:[#allocation8 + $0x48] sm:$0xff] %vm114, %v107
    %125 = vst.msk [vmem:[#allocation8 + $0x50] sm:$0xff] %vm114, %v108
    %126 = vst.msk [vmem:[#allocation8 + $0x58] sm:$0xff] %vm114, %v109
    %127 = vst.msk [vmem:[#allocation8 + $0x60] sm:$0xff] %vm114, %v110
    %128 = vst.msk [vmem:[#allocation8 + $0x68] sm:$0xff] %vm114, %v111
    %129 = vst.msk [vmem:[#allocation8 + $0x70] sm:$0xff] %vm114, %v112
    %130 = vst.msk [vmem:[#allocation8 + $0x78] sm:$0xff] %vm114, %v113
    %v131 = vld [vmem:[#allocation5] sm:$0x3]
    %v132 = vld [vmem:[#allocation5 + $0x2] sm:$0x3]
    %vm133 = vcmask 254976
    %134 = vst.msk [vmem:[#allocation10] sm:$0x3] %vm133, %v131
    %135 = vst.msk [vmem:[#allocation10 + $0x2] sm:$0x3] %vm133, %v132
    %v136 = vld [vmem:[%s3] sm:$0xff]
    %v137 = vld [vmem:[%s3 + $0x8] sm:$0xff]
    %v138 = vld [vmem:[%s3 + $0x10] sm:$0xff]
    %v139 = vld [vmem:[%s3 + $0x18] sm:$0xff]
    %v140 = vld [vmem:[%s3 + $0x20] sm:$0xff]
    %v141 = vld [vmem:[%s3 + $0x28] sm:$0xff]
    %v142 = vld [vmem:[%s3 + $0x30] sm:$0xff]
    %v143 = vld [vmem:[%s5] sm:$0xff]
    %v144 = vld [vmem:[%s5 + $0x8] sm:$0xff]
    %v145 = vld [vmem:[%s5 + $0x10] sm:$0xff]
    %v146 = vld [vmem:[%s5 + $0x18] sm:$0xff]
    %v147 = vlaneseq
    %v148 = vand.u32 %v147, 127
    loop: start=0, step=1, limit=16
    $region90: #{tpu_custom_call.1} parent=1 // loop_pre_header
      _
    $region91: #{tpu_custom_call.1} parent=1 // loop_header
      %s150 = sphi 0, %s154
      %p151 = scmp.ge.s32.totalorder %s150, 16
    $region92: #{tpu_custom_call.1} parent=1 // loop_header_branch
      %153 = sbr.rel (%p151) target = $region96
    $region93: #{tpu_custom_call.1} parent=1 // loop_body
      %s155 = smul.u32 %s150, 2
      %s156 = scalar_lea.vmem %s0, %s155
      %v157 = vld [vmem:[%s156] sm:$0x3]
      %158 = vset.pattern.permute.xlu0 0
      %159 = vperm.xlu0 %158, %v157
      %v160 = vpop.permute.xlu0 %159
      %vm161 = vcmp.eq.s32.totalorder %v148, %v160
      %v162 = vsel %vm161, 1, 0
      %v163 = vcvt.s32.f32 %v162
      %s164 = scalar_lea.vmem %s4, %s150
      %v165 = vld [vmem:[%s164] sm:$0x1]
      %v167 = vlaneseq
      %v168 = vshrl.u32 %v167, 7
      %v169 = vsub.s32 0, %v168
      %v170 = vrot.slane %v165, %v169
      %vm172 = vcmask 457728
      %v174 = vsel %vm172, %v163, 0
      %176 = vmatprep.subr.mxu0 0.0
      %177 = vmatpush1.msra.mxu0 %v136
      %178 = vmatprep.subr.mxu0 0.0
      %179 = vmatpush1.msra.mxu0 %v137
      %180 = vmatprep.subr.mxu0 0.0
      %181 = vmatpush1.msra.mxu0 %v138
      %182 = vmatprep.subr.mxu0 0.0
      %183 = vmatpush1.msra.mxu0 %v139
      %184 = vmatprep.subr.mxu0 0.0
      %185 = vmatpush1.msra.mxu0 %v140
      %186 = vmatprep.subr.mxu0 0.0
      %187 = vmatpush1.msra.mxu0 %v141
      %188 = vmatprep.subr.mxu0 0.0
      %189 = vmatpush1.msra.mxu0 %v142
      %190 = vmatprep.subr.mxu0 0.0
      %191 = vmatpush1.msra.mxu0 0.0
      %192 = vmatprep.subr.mxu0 0.0
      %193 = vmatpush1.msra.mxu0 0.0
      %194 = vmatprep.subr.mxu0 0.0
      %195 = vmatpush1.msra.mxu0 0.0
      %196 = vmatprep.subr.mxu0 0.0
      %197 = vmatpush1.msra.mxu0 0.0
      %198 = vmatprep.subr.mxu0 0.0
      %199 = vmatpush1.msra.mxu0 0.0
      %200 = vmatprep.subr.mxu0 0.0
      %201 = vmatpush1.msra.mxu0 0.0
      %202 = vmatprep.subr.mxu0 0.0
      %203 = vmatpush1.msra.mxu0 0.0
      %204 = vmatprep.subr.mxu0 0.0
      %205 = vmatpush1.msra.mxu0 0.0
      %206 = vmatprep.subr.mxu0 0.0
      %207 = vmatpush1.msra.mxu0 0.0
      %208 = vmatprep.subr.mxu0 0.0
      %209 = vmatpush1.msra.mxu0 0.0
      %210 = vmatprep.subr.mxu0 0.0
      %211 = vmatpush1.msra.mxu0 0.0
      %212 = vmatprep.subr.mxu0 0.0
      %213 = vmatpush1.msra.mxu0 0.0
      %214 = vmatprep.subr.mxu0 0.0
      %215 = vmatpush1.msra.mxu0 0.0
      %216 = vmatprep.subr.mxu0 0.0
      %217 = vmatpush1.msra.mxu0 0.0
      %218 = vmatprep.subr.mxu0 0.0
      %219 = vmatpush1.msra.mxu0 0.0
      %220 = vmatprep.subr.mxu0 0.0
      %221 = vmatpush1.msra.mxu0 0.0
      %222 = vmatprep.subr.mxu0 0.0
      %223 = vmatpush1.msra.mxu0 0.0
      %224 = vmatprep.subr.mxu0 0.0
      %225 = vmatpush1.msra.mxu0 0.0
      %226 = vmatprep.subr.mxu0 0.0
      %227 = vmatpush1.msra.mxu0 0.0
      %228 = vmatprep.subr.mxu0 0.0
      %229 = vmatpush1.msra.mxu0 0.0
      %230 = vmatprep.subr.mxu0 0.0
      %231 = vmatpush1.msra.mxu0 0.0
      %232 = vmatprep.subr.mxu0 0.0
      %233 = vmatpush1.msra.mxu0 0.0
      %234 = vmatprep.subr.mxu0 0.0
      %235 = vmatpush1.msra.mxu0 0.0
      %236 = vmatprep.subr.mxu0 0.0
      %237 = vmatpush1.msra.mxu0 0.0
      %238 = vmatprep.subr.mxu0 0.0
      %239 = vmatpush1.msra.mxu0 0.0
      %240 = vmatprep.mubr.f32.mxu0 0.0
      %241 = vmatmul.mubr.f32.gmra.mrb[0].mxu0 %v174
      %v242 = vpop.f32.mrb[0].mxu0
      %v243 = vadd.f32 %v170, %v242
      %v244 = vpop.f32.mrb[0].mxu0
      %245 = vdwg.mxu0
      %v246 = vld [vmem:[%s6] sm:$0xff]
      %v247 = vld [vmem:[%s6 + $0x8] sm:$0xff]
      %v248 = vld [vmem:[%s6 + $0x10] sm:$0xff]
      %v249 = vld [vmem:[%s6 + $0x18] sm:$0xff]
      %v250 = vld [vmem:[%s7] sm:$0x1]
      %v252 = vlaneseq
      %v253 = vshrl.u32 %v252, 7
      %v254 = vsub.s32 0, %v253
      %v255 = vrot.slane %v250, %v254
      %v258 = vsel %vm114, %v243, 0
      %260 = vmatprep.subr.mxu0 0.0
      %261 = vmatpush1.msra.mxu0 %v246
      %262 = vmatprep.subr.mxu0 0.0
      %263 = vmatpush1.msra.mxu0 %v247
      %264 = vmatprep.subr.mxu0 0.0
      %265 = vmatpush1.msra.mxu0 %v248
      %266 = vmatprep.subr.mxu0 0.0
      %267 = vmatpush1.msra.mxu0 %v249
      %268 = vmatprep.subr.mxu0 0.0
      %269 = vmatpush1.msra.mxu0 0.0
      %270 = vmatprep.subr.mxu0 0.0
      %271 = vmatpush1.msra.mxu0 0.0
      %272 = vmatprep.subr.mxu0 0.0
      %273 = vmatpush1.msra.mxu0 0.0
      %274 = vmatprep.subr.mxu0 0.0
      %275 = vmatpush1.msra.mxu0 0.0
      %276 = vmatprep.subr.mxu0 0.0
      %277 = vmatpush1.msra.mxu0 0.0
      %278 = vmatprep.subr.mxu0 0.0
      %279 = vmatpush1.msra.mxu0 0.0
      %280 = vmatprep.subr.mxu0 0.0
      %281 = vmatpush1.msra.mxu0 0.0
      %282 = vmatprep.subr.mxu0 0.0
      %283 = vmatpush1.msra.mxu0 0.0
      %284 = vmatprep.subr.mxu0 0.0
      %285 = vmatpush1.msra.mxu0 0.0
      %286 = vmatprep.subr.mxu0 0.0
      %287 = vmatpush1.msra.mxu0 0.0
      %288 = vmatprep.subr.mxu0 0.0
      %289 = vmatpush1.msra.mxu0 0.0
      %290 = vmatprep.subr.mxu0 0.0
      %291 = vmatpush1.msra.mxu0 0.0
      %292 = vmatprep.subr.mxu0 0.0
      %293 = vmatpush1.msra.mxu0 0.0
      %294 = vmatprep.subr.mxu0 0.0
      %295 = vmatpush1.msra.mxu0 0.0
      %296 = vmatprep.subr.mxu0 0.0
      %297 = vmatpush1.msra.mxu0 0.0
      %298 = vmatprep.subr.mxu0 0.0
      %299 = vmatpush1.msra.mxu0 0.0
      %300 = vmatprep.subr.mxu0 0.0
      %301 = vmatpush1.msra.mxu0 0.0
      %302 = vmatprep.subr.mxu0 0.0
      %303 = vmatpush1.msra.mxu0 0.0
      %304 = vmatprep.subr.mxu0 0.0
      %305 = vmatpush1.msra.mxu0 0.0
      %306 = vmatprep.subr.mxu0 0.0
      %307 = vmatpush1.msra.mxu0 0.0
      %308 = vmatprep.subr.mxu0 0.0
      %309 = vmatpush1.msra.mxu0 0.0
      %310 = vmatprep.subr.mxu0 0.0
      %311 = vmatpush1.msra.mxu0 0.0
      %312 = vmatprep.subr.mxu0 0.0
      %313 = vmatpush1.msra.mxu0 0.0
      %314 = vmatprep.subr.mxu0 0.0
      %315 = vmatpush1.msra.mxu0 0.0
      %316 = vmatprep.subr.mxu0 0.0
      %317 = vmatpush1.msra.mxu0 0.0
      %318 = vmatprep.subr.mxu0 0.0
      %319 = vmatpush1.msra.mxu0 0.0
      %320 = vmatprep.subr.mxu0 0.0
      %321 = vmatpush1.msra.mxu0 0.0
      %322 = vmatprep.subr.mxu0 0.0
      %323 = vmatpush1.msra.mxu0 0.0
      %324 = vmatprep.mubr.f32.mxu0 0.0
      %325 = vmatmul.mubr.f32.gmra.mrb[0].mxu0 %v258
      %v326 = vpop.f32.mrb[0].mxu0
      %v327 = vadd.f32 %v255, %v326
      %v328 = vpop.f32.mrb[0].mxu0
      %329 = vdwg.mxu0
      %vm330 = vcmp.gt.f32.partialorder %v327, 0.0
      %v331 = vadd.f32 %v327, 1.0
      %v332 = vmul.f32 %v327, 1.442695
      %v333 = vpow.pop %v332
      %v334 = vsel %vm330, %v331, %v333
      %v335 = vld [vmem:[#allocation8] sm:$0xff]
      %v336 = vld [vmem:[#allocation8 + $0x8] sm:$0xff]
      %v337 = vld [vmem:[#allocation8 + $0x10] sm:$0xff]
      %v338 = vld [vmem:[#allocation8 + $0x18] sm:$0xff]
      %v339 = vld [vmem:[#allocation8 + $0x20] sm:$0xff]
      %v340 = vld [vmem:[#allocation8 + $0x28] sm:$0xff]
      %v341 = vld [vmem:[#allocation8 + $0x30] sm:$0xff]
      %v342 = vld [vmem:[#allocation8 + $0x38] sm:$0xff]
      %v343 = vlaneseq
      %v344 = vshrl.u32 %v343, 7
      %v345 = vsub.s32 0, %v344
      %v346 = vrot.slane %v334, %v345
      %s348 = sor.u32 256, 32
      %349 = vbcast.lane.b32.xlu0 %v346, %s348
      %v350 = vpop.permute.xlu0 %349
      %s352 = sor.u32 256, 40
      %353 = vbcast.lane.b32.xlu0 %v346, %s352
      %v354 = vpop.permute.xlu0 %353
      %s356 = sor.u32 256, 48
      %357 = vbcast.lane.b32.xlu0 %v346, %s356
      %v358 = vpop.permute.xlu0 %357
      %s360 = sor.u32 256, 56
      %361 = vbcast.lane.b32.xlu0 %v346, %s360
      %v362 = vpop.permute.xlu0 %361
      %v363 = vlaneseq
      %v364 = vshrl.u32 %v363, 7
      %v365 = vsub.s32 1, %v364
      %v366 = vrot.slane %v334, %v365
      %s368 = sor.u32 256, 32
      %369 = vbcast.lane.b32.xlu0 %v366, %s368
      %v370 = vpop.permute.xlu0 %369
      %s372 = sor.u32 256, 40
      %373 = vbcast.lane.b32.xlu0 %v366, %s372
      %v374 = vpop.permute.xlu0 %373
      %s376 = sor.u32 256, 48
      %377 = vbcast.lane.b32.xlu0 %v366, %s376
      %v378 = vpop.permute.xlu0 %377
      %s380 = sor.u32 256, 56
      %381 = vbcast.lane.b32.xlu0 %v366, %s380
      %v382 = vpop.permute.xlu0 %381
      %v385 = vunpack.c.l.s4 1966171168
      %v386 = vunpack.c.0.s8 %v385
      %v387 = vlaneseq
      %v388 = vshrl.u32 %v387, 7
      %v389 = vsub.s32 %v386, %v388
      %v390 = vrot.slane %v327, %v389
      %v391 = vcombine.high %v390, %v390
      %v393 = vunpack.c.l.s4 1966171168
      %v394 = vunpack.c.0.s8 %v393
      %v395 = vlaneseq
      %v396 = vshrl.u32 %v395, 7
      %v397 = vsub.s32 %v394, %v396
      %v398 = vrot.slane %v390, %v397
      %v400 = vunpack.c.l.s4 1966171168
      %v401 = vunpack.c.0.s8 %v400
      %v402 = vlaneseq
      %v403 = vshrl.u32 %v402, 7
      %v404 = vsub.s32 %v401, %v403
      %v405 = vrot.slane %v391, %v404
      %v406 = vlaneseq
      %v407 = vshrl.u32 %v406, 7
      %v408 = vsub.s32 0, %v407
      %v409 = vrot.slane %v398, %v408
      %v410 = vlaneseq
      %v411 = vshrl.u32 %v410, 7
      %v412 = vsub.s32 0, %v411
      %v413 = vrot.slane %v405, %v412
      %v416 = vmul.f32 %v350, %v409
      %v417 = vmul.f32 %v354, %v409
      %v418 = vmul.f32 %v358, %v409
      %v419 = vmul.f32 %v362, %v409
      %v420 = vmul.f32 %v370, %v413
      %v421 = vmul.f32 %v374, %v413
      %v422 = vmul.f32 %v378, %v413
      %v423 = vmul.f32 %v382, %v413
      %428 = vrot.lane.b32.xlu0 %v143, 64
      %v429 = vpop.permute.xlu0 %428
      %430 = vrot.lane.b32.xlu0 %v144, 64
      %v431 = vpop.permute.xlu0 %430
      %432 = vrot.lane.b32.xlu0 %v145, 64
      %v433 = vpop.permute.xlu0 %432
      %434 = vrot.lane.b32.xlu0 %v146, 64
      %v435 = vpop.permute.xlu0 %434
      %v440 = vmul.f32 %v416, %v429
      %v441 = vmul.f32 %v417, %v431
      %v442 = vmul.f32 %v418, %v433
      %v443 = vmul.f32 %v419, %v435
      %v444 = vmul.f32 %v420, %v429
      %v445 = vmul.f32 %v421, %v431
      %v446 = vmul.f32 %v422, %v433
      %v447 = vmul.f32 %v423, %v435
      %456 = vrot.lane.b32.xlu0 %v440, 64
      %v457 = vpop.permute.xlu0 %456
      %458 = vrot.lane.b32.xlu0 %v441, 64
      %v459 = vpop.permute.xlu0 %458
      %460 = vrot.lane.b32.xlu0 %v442, 64
      %v461 = vpop.permute.xlu0 %460
      %462 = vrot.lane.b32.xlu0 %v443, 64
      %v463 = vpop.permute.xlu0 %462
      %464 = vrot.lane.b32.xlu0 %v444, 64
      %v465 = vpop.permute.xlu0 %464
      %466 = vrot.lane.b32.xlu0 %v445, 64
      %v467 = vpop.permute.xlu0 %466
      %468 = vrot.lane.b32.xlu0 %v446, 64
      %v469 = vpop.permute.xlu0 %468
      %470 = vrot.lane.b32.xlu0 %v447, 64
      %v471 = vpop.permute.xlu0 %470
      %v480 = vadd.f32 %v335, %v457
      %v481 = vadd.f32 %v336, %v459
      %v482 = vadd.f32 %v337, %v461
      %v483 = vadd.f32 %v338, %v463
      %v484 = vadd.f32 %v339, %v465
      %v485 = vadd.f32 %v340, %v467
      %v486 = vadd.f32 %v341, %v469
      %v487 = vadd.f32 %v342, %v471
      %v488 = vld [vmem:[#allocation10] sm:$0x3]
      %490 = vrot.lane.b32.xlu0 %v334, 96
      %v491 = vpop.permute.xlu0 %490
      %v493 = vadd.f32 %v488, %v491
      %494 = vst.msk [vmem:[#allocation8] sm:$0xff] %vm114, %v480
      %495 = vst.msk [vmem:[#allocation8 + $0x8] sm:$0xff] %vm114, %v481
      %496 = vst.msk [vmem:[#allocation8 + $0x10] sm:$0xff] %vm114, %v482
      %497 = vst.msk [vmem:[#allocation8 + $0x18] sm:$0xff] %vm114, %v483
      %498 = vst.msk [vmem:[#allocation8 + $0x20] sm:$0xff] %vm114, %v484
      %499 = vst.msk [vmem:[#allocation8 + $0x28] sm:$0xff] %vm114, %v485
      %500 = vst.msk [vmem:[#allocation8 + $0x30] sm:$0xff] %vm114, %v486
      %501 = vst.msk [vmem:[#allocation8 + $0x38] sm:$0xff] %vm114, %v487
      %502 = vst.msk [vmem:[#allocation10] sm:$0x3] %vm133, %v493
      %504 = vbcast.lane.b32.xlu0 %v346, 256
      %v505 = vpop.permute.xlu0 %504
      %s507 = sor.u32 256, 8
      %508 = vbcast.lane.b32.xlu0 %v346, %s507
      %v509 = vpop.permute.xlu0 %508
      %s511 = sor.u32 256, 16
      %512 = vbcast.lane.b32.xlu0 %v346, %s511
      %v513 = vpop.permute.xlu0 %512
      %s515 = sor.u32 256, 24
      %516 = vbcast.lane.b32.xlu0 %v346, %s515
      %v517 = vpop.permute.xlu0 %516
      %519 = vbcast.lane.b32.xlu0 %v366, 256
      %v520 = vpop.permute.xlu0 %519
      %s522 = sor.u32 256, 8
      %523 = vbcast.lane.b32.xlu0 %v366, %s522
      %v524 = vpop.permute.xlu0 %523
      %s526 = sor.u32 256, 16
      %527 = vbcast.lane.b32.xlu0 %v366, %s526
      %v528 = vpop.permute.xlu0 %527
      %s530 = sor.u32 256, 24
      %531 = vbcast.lane.b32.xlu0 %v366, %s530
      %v532 = vpop.permute.xlu0 %531
      %v533 = vmul.f32 %v505, %v480
      %v534 = vmul.f32 %v509, %v481
      %v535 = vmul.f32 %v513, %v482
      %v536 = vmul.f32 %v517, %v483
      %v537 = vmul.f32 %v520, %v484
      %v538 = vmul.f32 %v524, %v485
      %v539 = vmul.f32 %v528, %v486
      %v540 = vmul.f32 %v532, %v487
      %v541 = vsel %vm114, %v533, 0.0
      %v542 = vsel %vm114, %v534, 0.0
      %v543 = vadd.f32 %v541, %v542
      %v544 = vsel %vm114, %v535, 0.0
      %v545 = vadd.f32 %v543, %v544
      %v546 = vsel %vm114, %v536, 0.0
      %v547 = vadd.f32 %v545, %v546
      %v548 = vrot.slane %v547, 4
      %v549 = vadd.f32 %v547, %v548
      %v550 = vrot.slane %v549, 2
      %v551 = vadd.f32 %v549, %v550
      %v552 = vrot.slane %v551, 1
      %v553 = vadd.f32 %v551, %v552
      %v554 = vsel %vm114, %v537, 0.0
      %v555 = vsel %vm114, %v538, 0.0
      %v556 = vadd.f32 %v554, %v555
      %v557 = vsel %vm114, %v539, 0.0
      %v558 = vadd.f32 %v556, %v557
      %v559 = vsel %vm114, %v540, 0.0
      %v560 = vadd.f32 %v558, %v559
      %v561 = vrot.slane %v560, 4
      %v562 = vadd.f32 %v560, %v561
      %v563 = vrot.slane %v562, 2
      %v564 = vadd.f32 %v562, %v563
      %v565 = vrot.slane %v564, 1
      %v566 = vadd.f32 %v564, %v565
      %v567 = vmul.f32 %v334, %v493
      %v569 = vsel %vm114, %v567, 0
      %571 = vmatprep.subr.mxu0 0.0
      %572 = vmatpush1.msra.mxu0 %v143
      %573 = vmatprep.subr.mxu0 0.0
      %574 = vmatpush1.msra.mxu0 %v144
      %575 = vmatprep.subr.mxu0 0.0
      %576 = vmatpush1.msra.mxu0 %v145
      %577 = vmatprep.subr.mxu0 0.0
      %578 = vmatpush1.msra.mxu0 %v146
      %579 = vmatprep.subr.mxu0 0.0
      %580 = vmatpush1.msra.mxu0 0.0
      %581 = vmatprep.subr.mxu0 0.0
      %582 = vmatpush1.msra.mxu0 0.0
      %583 = vmatprep.subr.mxu0 0.0
      %584 = vmatpush1.msra.mxu0 0.0
      %585 = vmatprep.subr.mxu0 0.0
      %586 = vmatpush1.msra.mxu0 0.0
      %587 = vmatprep.subr.mxu0 0.0
      %588 = vmatpush1.msra.mxu0 0.0
      %589 = vmatprep.subr.mxu0 0.0
      %590 = vmatpush1.msra.mxu0 0.0
      %591 = vmatprep.subr.mxu0 0.0
      %592 = vmatpush1.msra.mxu0 0.0
      %593 = vmatprep.subr.mxu0 0.0
      %594 = vmatpush1.msra.mxu0 0.0
      %595 = vmatprep.subr.mxu0 0.0
      %596 = vmatpush1.msra.mxu0 0.0
      %597 = vmatprep.subr.mxu0 0.0
      %598 = vmatpush1.msra.mxu0 0.0
      %599 = vmatprep.subr.mxu0 0.0
      %600 = vmatpush1.msra.mxu0 0.0
      %601 = vmatprep.subr.mxu0 0.0
      %602 = vmatpush1.msra.mxu0 0.0
      %603 = vmatprep.subr.mxu0 0.0
      %604 = vmatpush1.msra.mxu0 0.0
      %605 = vmatprep.subr.mxu0 0.0
      %606 = vmatpush1.msra.mxu0 0.0
      %607 = vmatprep.subr.mxu0 0.0
      %608 = vmatpush1.msra.mxu0 0.0
      %609 = vmatprep.subr.mxu0 0.0
      %610 = vmatpush1.msra.mxu0 0.0
      %611 = vmatprep.subr.mxu0 0.0
      %612 = vmatpush1.msra.mxu0 0.0
      %613 = vmatprep.subr.mxu0 0.0
      %614 = vmatpush1.msra.mxu0 0.0
      %615 = vmatprep.subr.mxu0 0.0
      %616 = vmatpush1.msra.mxu0 0.0
      %617 = vmatprep.subr.mxu0 0.0
      %618 = vmatpush1.msra.mxu0 0.0
      %619 = vmatprep.subr.mxu0 0.0
      %620 = vmatpush1.msra.mxu0 0.0
      %621 = vmatprep.subr.mxu0 0.0
      %622 = vmatpush1.msra.mxu0 0.0
      %623 = vmatprep.subr.mxu0 0.0
      %624 = vmatpush1.msra.mxu0 0.0
      %625 = vmatprep.subr.mxu0 0.0
      %626 = vmatpush1.msra.mxu0 0.0
      %627 = vmatprep.subr.mxu0 0.0
      %628 = vmatpush1.msra.mxu0 0.0
      %629 = vmatprep.subr.mxu0 0.0
      %630 = vmatpush1.msra.mxu0 0.0
      %631 = vmatprep.subr.mxu0 0.0
      %632 = vmatpush1.msra.mxu0 0.0
      %633 = vmatprep.subr.mxu0 0.0
      %634 = vmatpush1.msra.mxu0 0.0
      %635 = vmatprep.mubr.f32.mxu0 0.0
      %636 = vmatmul.mubr.f32.gmra.mrb[0].mxu0 %v569
      %v637 = vpop.f32.mrb[0].mxu0
      %v638 = vadd.f32 1e-06, %v637
      %v639 = vpop.f32.mrb[0].mxu0
      %640 = vdwg.mxu0
      %v641 = vrcp.pop %v638
      %v642 = vmul.f32 %v638, %v641
      %v643 = vsub.f32 2.0, %v642
      %v644 = vmul.f32 %v641, %v643
      %v646 = vrot.slane %v644, 1
      %v649 = vmul.f32 %v553, %v644
      %v650 = vmul.f32 %v566, %v646
      %v651 = vld [vmem:[%s8] sm:$0xff]
      %v652 = vld [vmem:[%s8 + $0x8] sm:$0xff]
      %v653 = vld [vmem:[%s8 + $0x10] sm:$0xff]
      %v654 = vld [vmem:[%s8 + $0x18] sm:$0xff]
      %v655 = vld [vmem:[%s9] sm:$0x1]
      %v657 = vlaneseq
      %v658 = vshrl.u32 %v657, 7
      %v659 = vsub.s32 0, %v658
      %v660 = vrot.slane %v655, %v659
      %v664 = vrot.slane %v650, 7
      %vm665 = vcmask 1041409
      %v666 = vsel %vm665, %v664, %v649
      %v667 = vsel %vm114, %v666, 0
      %669 = vmatprep.subr.mxu0 0.0
      %670 = vmatpush1.msra.mxu0 %v651
      %671 = vmatprep.subr.mxu0 0.0
      %672 = vmatpush1.msra.mxu0 %v652
      %673 = vmatprep.subr.mxu0 0.0
      %674 = vmatpush1.msra.mxu0 %v653
      %675 = vmatprep.subr.mxu0 0.0
      %676 = vmatpush1.msra.mxu0 %v654
      %677 = vmatprep.subr.mxu0 0.0
      %678 = vmatpush1.msra.mxu0 0.0
      %679 = vmatprep.subr.mxu0 0.0
      %680 = vmatpush1.msra.mxu0 0.0
      %681 = vmatprep.subr.mxu0 0.0
      %682 = vmatpush1.msra.mxu0 0.0
      %683 = vmatprep.subr.mxu0 0.0
      %684 = vmatpush1.msra.mxu0 0.0
      %685 = vmatprep.subr.mxu0 0.0
      %686 = vmatpush1.msra.mxu0 0.0
      %687 = vmatprep.subr.mxu0 0.0
      %688 = vmatpush1.msra.mxu0 0.0
      %689 = vmatprep.subr.mxu0 0.0
      %690 = vmatpush1.msra.mxu0 0.0
      %691 = vmatprep.subr.mxu0 0.0
      %692 = vmatpush1.msra.mxu0 0.0
      %693 = vmatprep.subr.mxu0 0.0
      %694 = vmatpush1.msra.mxu0 0.0
      %695 = vmatprep.subr.mxu0 0.0
      %696 = vmatpush1.msra.mxu0 0.0
      %697 = vmatprep.subr.mxu0 0.0
      %698 = vmatpush1.msra.mxu0 0.0
      %699 = vmatprep.subr.mxu0 0.0
      %700 = vmatpush1.msra.mxu0 0.0
      %701 = vmatprep.subr.mxu0 0.0
      %702 = vmatpush1.msra.mxu0 0.0
      %703 = vmatprep.subr.mxu0 0.0
      %704 = vmatpush1.msra.mxu0 0.0
      %705 = vmatprep.subr.mxu0 0.0
      %706 = vmatpush1.msra.mxu0 0.0
      %707 = vmatprep.subr.mxu0 0.0
      %708 = vmatpush1.msra.mxu0 0.0
      %709 = vmatprep.subr.mxu0 0.0
      %710 = vmatpush1.msra.mxu0 0.0
      %711 = vmatprep.subr.mxu0 0.0
      %712 = vmatpush1.msra.mxu0 0.0
      %713 = vmatprep.subr.mxu0 0.0
      %714 = vmatpush1.msra.mxu0 0.0
      %715 = vmatprep.subr.mxu0 0.0
      %716 = vmatpush1.msra.mxu0 0.0
      %717 = vmatprep.subr.mxu0 0.0
      %718 = vmatpush1.msra.mxu0 0.0
      %719 = vmatprep.subr.mxu0 0.0
      %720 = vmatpush1.msra.mxu0 0.0
      %721 = vmatprep.subr.mxu0 0.0
      %722 = vmatpush1.msra.mxu0 0.0
      %723 = vmatprep.subr.mxu0 0.0
      %724 = vmatpush1.msra.mxu0 0.0
      %725 = vmatprep.subr.mxu0 0.0
      %726 = vmatpush1.msra.mxu0 0.0
      %727 = vmatprep.subr.mxu0 0.0
      %728 = vmatpush1.msra.mxu0 0.0
      %729 = vmatprep.subr.mxu0 0.0
      %730 = vmatpush1.msra.mxu0 0.0
      %731 = vmatprep.subr.mxu0 0.0
      %732 = vmatpush1.msra.mxu0 0.0
      %733 = vmatprep.mubr.f32.mxu0 0.0
      %734 = vmatmul.mubr.f32.gmra.mrb[0].mxu0 %v667
      %v735 = vpop.f32.mrb[0].mxu0
      %v736 = vadd.f32 %v660, %v735
      %v737 = vpop.f32.mrb[0].mxu0
      %738 = vdwg.mxu0
      %v739 = vadd.f32 %v243, %v736
      %v740 = vld [vmem:[%s10] sm:$0x1]
      %v741 = vld [vmem:[%s11] sm:$0x1]
      %v742 = vsel %vm133, %v739, 0.0
      %743 = vadd.xlane.f32.xlu0 %v742
      %v744 = vpop.xlane.xlu0 %743
      %v745 = vrcp.pop 32.0
      %v746 = vmul.f32 %v744, %v745
      %v747 = vsub.f32 %v739, %v746
      %v748 = vmul.f32 %v747, %v747
      %v749 = vsel %vm133, %v748, 0.0
      %750 = vadd.xlane.f32.xlu0 %v749
      %v751 = vpop.xlane.xlu0 %750
      %v752 = vmul.f32 %v751, %v745
      %v753 = vadd.f32 %v752, 1e-05
      %v754 = vrsqrt.pop %v753
      %v755 = vmul.f32 %v747, %v754
      %v757 = vlaneseq
      %v758 = vshrl.u32 %v757, 7
      %v759 = vsub.s32 0, %v758
      %v760 = vrot.slane %v740, %v759
      %v762 = vmul.f32 %v755, %v760
      %v764 = vlaneseq
      %v765 = vshrl.u32 %v764, 7
      %v766 = vsub.s32 0, %v765
      %v767 = vrot.slane %v741, %v766
      %v769 = vadd.f32 %v762, %v767
      %v770 = vld [vmem:[%s14] sm:$0xff]
      %v771 = vld [vmem:[%s14 + $0x8] sm:$0xff]
      %v772 = vld [vmem:[%s14 + $0x10] sm:$0xff]
      %v773 = vld [vmem:[%s14 + $0x18] sm:$0xff]
      %v774 = vld [vmem:[%s15] sm:$0x1]
      %v776 = vlaneseq
      %v777 = vshrl.u32 %v776, 7
      %v778 = vsub.s32 0, %v777
      %v779 = vrot.slane %v774, %v778
      %v782 = vsel %vm114, %v769, 0
      %784 = vmatprep.subr.mxu0 0.0
      %785 = vmatpush1.msra.mxu0 %v770
      %786 = vmatprep.subr.mxu0 0.0
      %787 = vmatpush1.msra.mxu0 %v771
      %788 = vmatprep.subr.mxu0 0.0
      %789 = vmatpush1.msra.mxu0 %v772
      %790 = vmatprep.subr.mxu0 0.0
      %791 = vmatpush1.msra.mxu0 %v773
      %792 = vmatprep.subr.mxu0 0.0
      %793 = vmatpush1.msra.mxu0 0.0
      %794 = vmatprep.subr.mxu0 0.0
      %795 = vmatpush1.msra.mxu0 0.0
      %796 = vmatprep.subr.mxu0 0.0
      %797 = vmatpush1.msra.mxu0 0.0
      %798 = vmatprep.subr.mxu0 0.0
      %799 = vmatpush1.msra.mxu0 0.0
      %800 = vmatprep.subr.mxu0 0.0
      %801 = vmatpush1.msra.mxu0 0.0
      %802 = vmatprep.subr.mxu0 0.0
      %803 = vmatpush1.msra.mxu0 0.0
      %804 = vmatprep.subr.mxu0 0.0
      %805 = vmatpush1.msra.mxu0 0.0
      %806 = vmatprep.subr.mxu0 0.0
      %807 = vmatpush1.msra.mxu0 0.0
      %808 = vmatprep.subr.mxu0 0.0
      %809 = vmatpush1.msra.mxu0 0.0
      %810 = vmatprep.subr.mxu0 0.0
      %811 = vmatpush1.msra.mxu0 0.0
      %812 = vmatprep.subr.mxu0 0.0
      %813 = vmatpush1.msra.mxu0 0.0
      %814 = vmatprep.subr.mxu0 0.0
      %815 = vmatpush1.msra.mxu0 0.0
      %816 = vmatprep.subr.mxu0 0.0
      %817 = vmatpush1.msra.mxu0 0.0
      %818 = vmatprep.subr.mxu0 0.0
      %819 = vmatpush1.msra.mxu0 0.0
      %820 = vmatprep.subr.mxu0 0.0
      %821 = vmatpush1.msra.mxu0 0.0
      %822 = vmatprep.subr.mxu0 0.0
      %823 = vmatpush1.msra.mxu0 0.0
      %824 = vmatprep.subr.mxu0 0.0
      %825 = vmatpush1.msra.mxu0 0.0
      %826 = vmatprep.subr.mxu0 0.0
      %827 = vmatpush1.msra.mxu0 0.0
      %828 = vmatprep.subr.mxu0 0.0
      %829 = vmatpush1.msra.mxu0 0.0
      %830 = vmatprep.subr.mxu0 0.0
      %831 = vmatpush1.msra.mxu0 0.0
      %832 = vmatprep.subr.mxu0 0.0
      %833 = vmatpush1.msra.mxu0 0.0
      %834 = vmatprep.subr.mxu0 0.0
      %835 = vmatpush1.msra.mxu0 0.0
      %836 = vmatprep.subr.mxu0 0.0
      %837 = vmatpush1.msra.mxu0 0.0
      %838 = vmatprep.subr.mxu0 0.0
      %839 = vmatpush1.msra.mxu0 0.0
      %840 = vmatprep.subr.mxu0 0.0
      %841 = vmatpush1.msra.mxu0 0.0
      %842 = vmatprep.subr.mxu0 0.0
      %843 = vmatpush1.msra.mxu0 0.0
      %844 = vmatprep.subr.mxu0 0.0
      %845 = vmatpush1.msra.mxu0 0.0
      %846 = vmatprep.subr.mxu0 0.0
      %847 = vmatpush1.msra.mxu0 0.0
      %848 = vmatprep.mubr.f32.mxu0 0.0
      %849 = vmatmul.mubr.f32.gmra.mrb[0].mxu0 %v782
      %v850 = vpop.f32.mrb[0].mxu0
      %v851 = vadd.f32 %v779, %v850
      %v852 = vpop.f32.mrb[0].mxu0
      %853 = vdwg.mxu0
      %v854 = vmax.f32 %v851, 0.0
      %v855 = vld [vmem:[%s16] sm:$0xff]
      %v856 = vld [vmem:[%s16 + $0x8] sm:$0xff]
      %v857 = vld [vmem:[%s16 + $0x10] sm:$0xff]
      %v858 = vld [vmem:[%s16 + $0x18] sm:$0xff]
      %v859 = vld [vmem:[%s16 + $0x20] sm:$0xff]
      %v860 = vld [vmem:[%s16 + $0x28] sm:$0xff]
      %v861 = vld [vmem:[%s16 + $0x30] sm:$0xff]
      %v862 = vld [vmem:[%s16 + $0x38] sm:$0xff]
      %v863 = vld [vmem:[%s17] sm:$0x1]
      %v865 = vlaneseq
      %v866 = vshrl.u32 %v865, 7
      %v867 = vsub.s32 0, %v866
      %v868 = vrot.slane %v863, %v867
      %vm870 = vcmask 523264
      %v872 = vsel %vm870, %v854, 0
      %874 = vmatprep.subr.mxu0 0.0
      %875 = vmatpush1.msra.mxu0 %v855
      %876 = vmatprep.subr.mxu0 0.0
      %877 = vmatpush1.msra.mxu0 %v856
      %878 = vmatprep.subr.mxu0 0.0
      %879 = vmatpush1.msra.mxu0 %v857
      %880 = vmatprep.subr.mxu0 0.0
      %881 = vmatpush1.msra.mxu0 %v858
      %882 = vmatprep.subr.mxu0 0.0
      %883 = vmatpush1.msra.mxu0 %v859
      %884 = vmatprep.subr.mxu0 0.0
      %885 = vmatpush1.msra.mxu0 %v860
      %886 = vmatprep.subr.mxu0 0.0
      %887 = vmatpush1.msra.mxu0 %v861
      %888 = vmatprep.subr.mxu0 0.0
      %889 = vmatpush1.msra.mxu0 %v862
      %890 = vmatprep.subr.mxu0 0.0
      %891 = vmatpush1.msra.mxu0 0.0
      %892 = vmatprep.subr.mxu0 0.0
      %893 = vmatpush1.msra.mxu0 0.0
      %894 = vmatprep.subr.mxu0 0.0
      %895 = vmatpush1.msra.mxu0 0.0
      %896 = vmatprep.subr.mxu0 0.0
      %897 = vmatpush1.msra.mxu0 0.0
      %898 = vmatprep.subr.mxu0 0.0
      %899 = vmatpush1.msra.mxu0 0.0
      %900 = vmatprep.subr.mxu0 0.0
      %901 = vmatpush1.msra.mxu0 0.0
      %902 = vmatprep.subr.mxu0 0.0
      %903 = vmatpush1.msra.mxu0 0.0
      %904 = vmatprep.subr.mxu0 0.0
      %905 = vmatpush1.msra.mxu0 0.0
      %906 = vmatprep.subr.mxu0 0.0
      %907 = vmatpush1.msra.mxu0 0.0
      %908 = vmatprep.subr.mxu0 0.0
      %909 = vmatpush1.msra.mxu0 0.0
      %910 = vmatprep.subr.mxu0 0.0
      %911 = vmatpush1.msra.mxu0 0.0
      %912 = vmatprep.subr.mxu0 0.0
      %913 = vmatpush1.msra.mxu0 0.0
      %914 = vmatprep.subr.mxu0 0.0
      %915 = vmatpush1.msra.mxu0 0.0
      %916 = vmatprep.subr.mxu0 0.0
      %917 = vmatpush1.msra.mxu0 0.0
      %918 = vmatprep.subr.mxu0 0.0
      %919 = vmatpush1.msra.mxu0 0.0
      %920 = vmatprep.subr.mxu0 0.0
      %921 = vmatpush1.msra.mxu0 0.0
      %922 = vmatprep.subr.mxu0 0.0
      %923 = vmatpush1.msra.mxu0 0.0
      %924 = vmatprep.subr.mxu0 0.0
      %925 = vmatpush1.msra.mxu0 0.0
      %926 = vmatprep.subr.mxu0 0.0
      %927 = vmatpush1.msra.mxu0 0.0
      %928 = vmatprep.subr.mxu0 0.0
      %929 = vmatpush1.msra.mxu0 0.0
      %930 = vmatprep.subr.mxu0 0.0
      %931 = vmatpush1.msra.mxu0 0.0
      %932 = vmatprep.subr.mxu0 0.0
      %933 = vmatpush1.msra.mxu0 0.0
      %934 = vmatprep.subr.mxu0 0.0
      %935 = vmatpush1.msra.mxu0 0.0
      %936 = vmatprep.subr.mxu0 0.0
      %937 = vmatpush1.msra.mxu0 0.0
      %938 = vmatprep.mubr.f32.mxu0 0.0
      %939 = vmatmul.mubr.f32.gmra.mrb[0].mxu0 %v872
      %v940 = vpop.f32.mrb[0].mxu0
      %v941 = vadd.f32 %v868, %v940
      %v942 = vpop.f32.mrb[0].mxu0
      %943 = vdwg.mxu0
      %v944 = vadd.f32 %v769, %v941
      %v945 = vld [vmem:[%s12] sm:$0x1]
      %v946 = vld [vmem:[%s13] sm:$0x1]
      %v947 = vsel %vm133, %v944, 0.0
      %948 = vadd.xlane.f32.xlu0 %v947
      %v949 = vpop.xlane.xlu0 %948
      %v950 = vmul.f32 %v949, %v745
      %v951 = vsub.f32 %v944, %v950
      %v952 = vmul.f32 %v951, %v951
      %v953 = vsel %vm133, %v952, 0.0
      %954 = vadd.xlane.f32.xlu0 %v953
      %v955 = vpop.xlane.xlu0 %954
      %v956 = vmul.f32 %v955, %v745
      %v957 = vadd.f32 %v956, 1e-05
      %v958 = vrsqrt.pop %v957
      %v959 = vmul.f32 %v951, %v958
      %v961 = vlaneseq
      %v962 = vshrl.u32 %v961, 7
      %v963 = vsub.s32 0, %v962
      %v964 = vrot.slane %v945, %v963
      %v966 = vmul.f32 %v959, %v964
      %v968 = vlaneseq
      %v969 = vshrl.u32 %v968, 7
      %v970 = vsub.s32 0, %v969
      %v971 = vrot.slane %v946, %v970
      %v973 = vadd.f32 %v966, %v971
      %s974 = scalar_lea.vmem %s6, 32
      %v975 = vld [vmem:[%s974] sm:$0xff]
      %v976 = vld [vmem:[%s974 + $0x8] sm:$0xff]
      %v977 = vld [vmem:[%s974 + $0x10] sm:$0xff]
      %v978 = vld [vmem:[%s974 + $0x18] sm:$0xff]
      %s979 = scalar_lea.vmem %s7, 1
      %v980 = vld [vmem:[%s979] sm:$0x1]
      %v982 = vlaneseq
      %v983 = vshrl.u32 %v982, 7
      %v984 = vsub.s32 0, %v983
      %v985 = vrot.slane %v980, %v984
      %v988 = vsel %vm114, %v973, 0
      %990 = vmatprep.subr.mxu0 0.0
      %991 = vmatpush1.msra.mxu0 %v975
      %992 = vmatprep.subr.mxu0 0.0
      %993 = vmatpush1.msra.mxu0 %v976
      %994 = vmatprep.subr.mxu0 0.0
      %995 = vmatpush1.msra.mxu0 %v977
      %996 = vmatprep.subr.mxu0 0.0
      %997 = vmatpush1.msra.mxu0 %v978
      %998 = vmatprep.subr.mxu0 0.0
      %999 = vmatpush1.msra.mxu0 0.0
      %1000 = vmatprep.subr.mxu0 0.0
      %1001 = vmatpush1.msra.mxu0 0.0
      %1002 = vmatprep.subr.mxu0 0.0
      %1003 = vmatpush1.msra.mxu0 0.0
      %1004 = vmatprep.subr.mxu0 0.0
      %1005 = vmatpush1.msra.mxu0 0.0
      %1006 = vmatprep.subr.mxu0 0.0
      %1007 = vmatpush1.msra.mxu0 0.0
      %1008 = vmatprep.subr.mxu0 0.0
      %1009 = vmatpush1.msra.mxu0 0.0
      %1010 = vmatprep.subr.mxu0 0.0
      %1011 = vmatpush1.msra.mxu0 0.0
      %1012 = vmatprep.subr.mxu0 0.0
      %1013 = vmatpush1.msra.mxu0 0.0
      %1014 = vmatprep.subr.mxu0 0.0
      %1015 = vmatpush1.msra.mxu0 0.0
      %1016 = vmatprep.subr.mxu0 0.0
      %1017 = vmatpush1.msra.mxu0 0.0
      %1018 = vmatprep.subr.mxu0 0.0
      %1019 = vmatpush1.msra.mxu0 0.0
      %1020 = vmatprep.subr.mxu0 0.0
      %1021 = vmatpush1.msra.mxu0 0.0
      %1022 = vmatprep.subr.mxu0 0.0
      %1023 = vmatpush1.msra.mxu0 0.0
      %1024 = vmatprep.subr.mxu0 0.0
      %1025 = vmatpush1.msra.mxu0 0.0
      %1026 = vmatprep.subr.mxu0 0.0
      %1027 = vmatpush1.msra.mxu0 0.0
      %1028 = vmatprep.subr.mxu0 0.0
      %1029 = vmatpush1.msra.mxu0 0.0
      %1030 = vmatprep.subr.mxu0 0.0
      %1031 = vmatpush1.msra.mxu0 0.0
      %1032 = vmatprep.subr.mxu0 0.0
      %1033 = vmatpush1.msra.mxu0 0.0
      %1034 = vmatprep.subr.mxu0 0.0
      %1035 = vmatpush1.msra.mxu0 0.0
      %1036 = vmatprep.subr.mxu0 0.0
      %1037 = vmatpush1.msra.mxu0 0.0
      %1038 = vmatprep.subr.mxu0 0.0
      %1039 = vmatpush1.msra.mxu0 0.0
      %1040 = vmatprep.subr.mxu0 0.0
      %1041 = vmatpush1.msra.mxu0 0.0
      %1042 = vmatprep.subr.mxu0 0.0
      %1043 = vmatpush1.msra.mxu0 0.0
      %1044 = vmatprep.subr.mxu0 0.0
      %1045 = vmatpush1.msra.mxu0 0.0
      %1046 = vmatprep.subr.mxu0 0.0
      %1047 = vmatpush1.msra.mxu0 0.0
      %1048 = vmatprep.subr.mxu0 0.0
      %1049 = vmatpush1.msra.mxu0 0.0
      %1050 = vmatprep.subr.mxu0 0.0
      %1051 = vmatpush1.msra.mxu0 0.0
      %1052 = vmatprep.subr.mxu0 0.0
      %1053 = vmatpush1.msra.mxu0 0.0
      %1054 = vmatprep.mubr.f32.mxu0 0.0
      %1055 = vmatmul.mubr.f32.gmra.mrb[0].mxu0 %v988
      %v1056 = vpop.f32.mrb[0].mxu0
      %v1057 = vadd.f32 %v985, %v1056
      %v1058 = vpop.f32.mrb[0].mxu0
      %1059 = vdwg.mxu0
      %vm1060 = vcmp.gt.f32.partialorder %v1057, 0.0
      %v1061 = vadd.f32 %v1057, 1.0
      %v1062 = vmul.f32 %v1057, 1.442695
      %v1063 = vpow.pop %v1062
      %v1064 = vsel %vm1060, %v1061, %v1063
      %s1065 = scalar_lea.vmem [#allocation8], 64
      %v1066 = vld [vmem:[%s1065] sm:$0xff]
      %v1067 = vld [vmem:[%s1065 + $0x8] sm:$0xff]
      %v1068 = vld [vmem:[%s1065 + $0x10] sm:$0xff]
      %v1069 = vld [vmem:[%s1065 + $0x18] sm:$0xff]
      %v1070 = vld [vmem:[%s1065 + $0x20] sm:$0xff]
      %v1071 = vld [vmem:[%s1065 + $0x28] sm:$0xff]
      %v1072 = vld [vmem:[%s1065 + $0x30] sm:$0xff]
      %v1073 = vld [vmem:[%s1065 + $0x38] sm:$0xff]
      %v1074 = vlaneseq
      %v1075 = vshrl.u32 %v1074, 7
      %v1076 = vsub.s32 0, %v1075
      %v1077 = vrot.slane %v1064, %v1076
      %s1079 = sor.u32 256, 32
      %1080 = vbcast.lane.b32.xlu0 %v1077, %s1079
      %v1081 = vpop.permute.xlu0 %1080
      %s1083 = sor.u32 256, 40
      %1084 = vbcast.lane.b32.xlu0 %v1077, %s1083
      %v1085 = vpop.permute.xlu0 %1084
      %s1087 = sor.u32 256, 48
      %1088 = vbcast.lane.b32.xlu0 %v1077, %s1087
      %v1089 = vpop.permute.xlu0 %1088
      %s1091 = sor.u32 256, 56
      %1092 = vbcast.lane.b32.xlu0 %v1077, %s1091
      %v1093 = vpop.permute.xlu0 %1092
      %v1094 = vlaneseq
      %v1095 = vshrl.u32 %v1094, 7
      %v1096 = vsub.s32 1, %v1095
      %v1097 = vrot.slane %v1064, %v1096
      %s1099 = sor.u32 256, 32
      %1100 = vbcast.lane.b32.xlu0 %v1097, %s1099
      %v1101 = vpop.permute.xlu0 %1100
      %s1103 = sor.u32 256, 40
      %1104 = vbcast.lane.b32.xlu0 %v1097, %s1103
      %v1105 = vpop.permute.xlu0 %1104
      %s1107 = sor.u32 256, 48
      %1108 = vbcast.lane.b32.xlu0 %v1097, %s1107
      %v1109 = vpop.permute.xlu0 %1108
      %s1111 = sor.u32 256, 56
      %1112 = vbcast.lane.b32.xlu0 %v1097, %s1111
      %v1113 = vpop.permute.xlu0 %1112
      %v1116 = vunpack.c.l.s4 1966171168
      %v1117 = vunpack.c.0.s8 %v1116
      %v1118 = vlaneseq
      %v1119 = vshrl.u32 %v1118, 7
      %v1120 = vsub.s32 %v1117, %v1119
      %v1121 = vrot.slane %v1057, %v1120
      %v1122 = vcombine.high %v1121, %v1121
      %v1124 = vunpack.c.l.s4 1966171168
      %v1125 = vunpack.c.0.s8 %v1124
      %v1126 = vlaneseq
      %v1127 = vshrl.u32 %v1126, 7
      %v1128 = vsub.s32 %v1125, %v1127
      %v1129 = vrot.slane %v1121, %v1128
      %v1131 = vunpack.c.l.s4 1966171168
      %v1132 = vunpack.c.0.s8 %v1131
      %v1133 = vlaneseq
      %v1134 = vshrl.u32 %v1133, 7
      %v1135 = vsub.s32 %v1132, %v1134
      %v1136 = vrot.slane %v1122, %v1135
      %v1137 = vlaneseq
      %v1138 = vshrl.u32 %v1137, 7
      %v1139 = vsub.s32 0, %v1138
      %v1140 = vrot.slane %v1129, %v1139
      %v1141 = vlaneseq
      %v1142 = vshrl.u32 %v1141, 7
      %v1143 = vsub.s32 0, %v1142
      %v1144 = vrot.slane %v1136, %v1143
      %v1147 = vmul.f32 %v1081, %v1140
      %v1148 = vmul.f32 %v1085, %v1140
      %v1149 = vmul.f32 %v1089, %v1140
      %v1150 = vmul.f32 %v1093, %v1140
      %v1151 = vmul.f32 %v1101, %v1144
      %v1152 = vmul.f32 %v1105, %v1144
      %v1153 = vmul.f32 %v1109, %v1144
      %v1154 = vmul.f32 %v1113, %v1144
      %v1155 = vmul.f32 %v1147, %v429
      %v1156 = vmul.f32 %v1148, %v431
      %v1157 = vmul.f32 %v1149, %v433
      %v1158 = vmul.f32 %v1150, %v435
      %v1159 = vmul.f32 %v1151, %v429
      %v1160 = vmul.f32 %v1152, %v431
      %v1161 = vmul.f32 %v1153, %v433
      %v1162 = vmul.f32 %v1154, %v435
      %1171 = vrot.lane.b32.xlu0 %v1155, 64
      %v1172 = vpop.permute.xlu0 %1171
      %1173 = vrot.lane.b32.xlu0 %v1156, 64
      %v1174 = vpop.permute.xlu0 %1173
      %1175 = vrot.lane.b32.xlu0 %v1157, 64
      %v1176 = vpop.permute.xlu0 %1175
      %1177 = vrot.lane.b32.xlu0 %v1158, 64
      %v1178 = vpop.permute.xlu0 %1177
      %1179 = vrot.lane.b32.xlu0 %v1159, 64
      %v1180 = vpop.permute.xlu0 %1179
      %1181 = vrot.lane.b32.xlu0 %v1160, 64
      %v1182 = vpop.permute.xlu0 %1181
      %1183 = vrot.lane.b32.xlu0 %v1161, 64
      %v1184 = vpop.permute.xlu0 %1183
      %1185 = vrot.lane.b32.xlu0 %v1162, 64
      %v1186 = vpop.permute.xlu0 %1185
      %v1195 = vadd.f32 %v1066, %v1172
      %v1196 = vadd.f32 %v1067, %v1174
      %v1197 = vadd.f32 %v1068, %v1176
      %v1198 = vadd.f32 %v1069, %v1178
      %v1199 = vadd.f32 %v1070, %v1180
      %v1200 = vadd.f32 %v1071, %v1182
      %v1201 = vadd.f32 %v1072, %v1184
      %v1202 = vadd.f32 %v1073, %v1186
      %s1203 = scalar_lea.vmem [#allocation10], 2
      %v1204 = vld [vmem:[%s1203] sm:$0x3]
      %1206 = vrot.lane.b32.xlu0 %v1064, 96
      %v1207 = vpop.permute.xlu0 %1206
      %v1209 = vadd.f32 %v1204, %v1207
      %1210 = vst.msk [vmem:[%s1065] sm:$0xff] %vm114, %v1195
      %1211 = vst.msk [vmem:[%s1065 + $0x8] sm:$0xff] %vm114, %v1196
      %1212 = vst.msk [vmem:[%s1065 + $0x10] sm:$0xff] %vm114, %v1197
      %1213 = vst.msk [vmem:[%s1065 + $0x18] sm:$0xff] %vm114, %v1198
      %1214 = vst.msk [vmem:[%s1065 + $0x20] sm:$0xff] %vm114, %v1199
      %1215 = vst.msk [vmem:[%s1065 + $0x28] sm:$0xff] %vm114, %v1200
      %1216 = vst.msk [vmem:[%s1065 + $0x30] sm:$0xff] %vm114, %v1201
      %1217 = vst.msk [vmem:[%s1065 + $0x38] sm:$0xff] %vm114, %v1202
      %1218 = vst.msk [vmem:[%s1203] sm:$0x3] %vm133, %v1209
      %1220 = vbcast.lane.b32.xlu0 %v1077, 256
      %v1221 = vpop.permute.xlu0 %1220
      %s1223 = sor.u32 256, 8
      %1224 = vbcast.lane.b32.xlu0 %v1077, %s1223
      %v1225 = vpop.permute.xlu0 %1224
      %s1227 = sor.u32 256, 16
      %1228 = vbcast.lane.b32.xlu0 %v1077, %s1227
      %v1229 = vpop.permute.xlu0 %1228
      %s1231 = sor.u32 256, 24
      %1232 = vbcast.lane.b32.xlu0 %v1077, %s1231
      %v1233 = vpop.permute.xlu0 %1232
      %1235 = vbcast.lane.b32.xlu0 %v1097, 256
      %v1236 = vpop.permute.xlu0 %1235
      %s1238 = sor.u32 256, 8
      %1239 = vbcast.lane.b32.xlu0 %v1097, %s1238
      %v1240 = vpop.permute.xlu0 %1239
      %s1242 = sor.u32 256, 16
      %1243 = vbcast.lane.b32.xlu0 %v1097, %s1242
      %v1244 = vpop.permute.xlu0 %1243
      %s1246 = sor.u32 256, 24
      %1247 = vbcast.lane.b32.xlu0 %v1097, %s1246
      %v1248 = vpop.permute.xlu0 %1247
      %v1249 = vmul.f32 %v1221, %v1195
      %v1250 = vmul.f32 %v1225, %v1196
      %v1251 = vmul.f32 %v1229, %v1197
      %v1252 = vmul.f32 %v1233, %v1198
      %v1253 = vmul.f32 %v1236, %v1199
      %v1254 = vmul.f32 %v1240, %v1200
      %v1255 = vmul.f32 %v1244, %v1201
      %v1256 = vmul.f32 %v1248, %v1202
      %v1257 = vsel %vm114, %v1249, 0.0
      %v1258 = vsel %vm114, %v1250, 0.0
      %v1259 = vadd.f32 %v1257, %v1258
      %v1260 = vsel %vm114, %v1251, 0.0
      %v1261 = vadd.f32 %v1259, %v1260
      %v1262 = vsel %vm114, %v1252, 0.0
      %v1263 = vadd.f32 %v1261, %v1262
      %v1264 = vrot.slane %v1263, 4
      %v1265 = vadd.f32 %v1263, %v1264
      %v1266 = vrot.slane %v1265, 2
      %v1267 = vadd.f32 %v1265, %v1266
      %v1268 = vrot.slane %v1267, 1
      %v1269 = vadd.f32 %v1267, %v1268
      %v1270 = vsel %vm114, %v1253, 0.0
      %v1271 = vsel %vm114, %v1254, 0.0
      %v1272 = vadd.f32 %v1270, %v1271
      %v1273 = vsel %vm114, %v1255, 0.0
      %v1274 = vadd.f32 %v1272, %v1273
      %v1275 = vsel %vm114, %v1256, 0.0
      %v1276 = vadd.f32 %v1274, %v1275
      %v1277 = vrot.slane %v1276, 4
      %v1278 = vadd.f32 %v1276, %v1277
      %v1279 = vrot.slane %v1278, 2
      %v1280 = vadd.f32 %v1278, %v1279
      %v1281 = vrot.slane %v1280, 1
      %v1282 = vadd.f32 %v1280, %v1281
      %v1283 = vmul.f32 %v1064, %v1209
      %v1285 = vsel %vm114, %v1283, 0
      %1287 = vmatprep.subr.mxu0 0.0
      %1288 = vmatpush1.msra.mxu0 %v143
      %1289 = vmatprep.subr.mxu0 0.0
      %1290 = vmatpush1.msra.mxu0 %v144
      %1291 = vmatprep.subr.mxu0 0.0
      %1292 = vmatpush1.msra.mxu0 %v145
      %1293 = vmatprep.subr.mxu0 0.0
      %1294 = vmatpush1.msra.mxu0 %v146
      %1295 = vmatprep.subr.mxu0 0.0
      %1296 = vmatpush1.msra.mxu0 0.0
      %1297 = vmatprep.subr.mxu0 0.0
      %1298 = vmatpush1.msra.mxu0 0.0
      %1299 = vmatprep.subr.mxu0 0.0
      %1300 = vmatpush1.msra.mxu0 0.0
      %1301 = vmatprep.subr.mxu0 0.0
      %1302 = vmatpush1.msra.mxu0 0.0
      %1303 = vmatprep.subr.mxu0 0.0
      %1304 = vmatpush1.msra.mxu0 0.0
      %1305 = vmatprep.subr.mxu0 0.0
      %1306 = vmatpush1.msra.mxu0 0.0
      %1307 = vmatprep.subr.mxu0 0.0
      %1308 = vmatpush1.msra.mxu0 0.0
      %1309 = vmatprep.subr.mxu0 0.0
      %1310 = vmatpush1.msra.mxu0 0.0
      %1311 = vmatprep.subr.mxu0 0.0
      %1312 = vmatpush1.msra.mxu0 0.0
      %1313 = vmatprep.subr.mxu0 0.0
      %1314 = vmatpush1.msra.mxu0 0.0
      %1315 = vmatprep.subr.mxu0 0.0
      %1316 = vmatpush1.msra.mxu0 0.0
      %1317 = vmatprep.subr.mxu0 0.0
      %1318 = vmatpush1.msra.mxu0 0.0
      %1319 = vmatprep.subr.mxu0 0.0
      %1320 = vmatpush1.msra.mxu0 0.0
      %1321 = vmatprep.subr.mxu0 0.0
      %1322 = vmatpush1.msra.mxu0 0.0
      %1323 = vmatprep.subr.mxu0 0.0
      %1324 = vmatpush1.msra.mxu0 0.0
      %1325 = vmatprep.subr.mxu0 0.0
      %1326 = vmatpush1.msra.mxu0 0.0
      %1327 = vmatprep.subr.mxu0 0.0
      %1328 = vmatpush1.msra.mxu0 0.0
      %1329 = vmatprep.subr.mxu0 0.0
      %1330 = vmatpush1.msra.mxu0 0.0
      %1331 = vmatprep.subr.mxu0 0.0
      %1332 = vmatpush1.msra.mxu0 0.0
      %1333 = vmatprep.subr.mxu0 0.0
      %1334 = vmatpush1.msra.mxu0 0.0
      %1335 = vmatprep.subr.mxu0 0.0
      %1336 = vmatpush1.msra.mxu0 0.0
      %1337 = vmatprep.subr.mxu0 0.0
      %1338 = vmatpush1.msra.mxu0 0.0
      %1339 = vmatprep.subr.mxu0 0.0
      %1340 = vmatpush1.msra.mxu0 0.0
      %1341 = vmatprep.subr.mxu0 0.0
      %1342 = vmatpush1.msra.mxu0 0.0
      %1343 = vmatprep.subr.mxu0 0.0
      %1344 = vmatpush1.msra.mxu0 0.0
      %1345 = vmatprep.subr.mxu0 0.0
      %1346 = vmatpush1.msra.mxu0 0.0
      %1347 = vmatprep.subr.mxu0 0.0
      %1348 = vmatpush1.msra.mxu0 0.0
      %1349 = vmatprep.subr.mxu0 0.0
      %1350 = vmatpush1.msra.mxu0 0.0
      %1351 = vmatprep.mubr.f32.mxu0 0.0
      %1352 = vmatmul.mubr.f32.gmra.mrb[0].mxu0 %v1285
      %v1353 = vpop.f32.mrb[0].mxu0
      %v1354 = vadd.f32 1e-06, %v1353
      %v1355 = vpop.f32.mrb[0].mxu0
      %1356 = vdwg.mxu0
      %v1357 = vrcp.pop %v1354
      %v1358 = vmul.f32 %v1354, %v1357
      %v1359 = vsub.f32 2.0, %v1358
      %v1360 = vmul.f32 %v1357, %v1359
      %v1362 = vrot.slane %v1360, 1
      %v1365 = vmul.f32 %v1269, %v1360
      %v1366 = vmul.f32 %v1282, %v1362
      %s1367 = scalar_lea.vmem %s8, 32
      %v1368 = vld [vmem:[%s1367] sm:$0xff]
      %v1369 = vld [vmem:[%s1367 + $0x8] sm:$0xff]
      %v1370 = vld [vmem:[%s1367 + $0x10] sm:$0xff]
      %v1371 = vld [vmem:[%s1367 + $0x18] sm:$0xff]
      %s1372 = scalar_lea.vmem %s9, 1
      %v1373 = vld [vmem:[%s1372] sm:$0x1]
      %v1375 = vlaneseq
      %v1376 = vshrl.u32 %v1375, 7
      %v1377 = vsub.s32 0, %v1376
      %v1378 = vrot.slane %v1373, %v1377
      %v1382 = vrot.slane %v1366, 7
      %v1383 = vsel %vm665, %v1382, %v1365
      %v1384 = vsel %vm114, %v1383, 0
      %1386 = vmatprep.subr.mxu0 0.0
      %1387 = vmatpush1.msra.mxu0 %v1368
      %1388 = vmatprep.subr.mxu0 0.0
      %1389 = vmatpush1.msra.mxu0 %v1369
      %1390 = vmatprep.subr.mxu0 0.0
      %1391 = vmatpush1.msra.mxu0 %v1370
      %1392 = vmatprep.subr.mxu0 0.0
      %1393 = vmatpush1.msra.mxu0 %v1371
      %1394 = vmatprep.subr.mxu0 0.0
      %1395 = vmatpush1.msra.mxu0 0.0
      %1396 = vmatprep.subr.mxu0 0.0
      %1397 = vmatpush1.msra.mxu0 0.0
      %1398 = vmatprep.subr.mxu0 0.0
      %1399 = vmatpush1.msra.mxu0 0.0
      %1400 = vmatprep.subr.mxu0 0.0
      %1401 = vmatpush1.msra.mxu0 0.0
      %1402 = vmatprep.subr.mxu0 0.0
      %1403 = vmatpush1.msra.mxu0 0.0
      %1404 = vmatprep.subr.mxu0 0.0
      %1405 = vmatpush1.msra.mxu0 0.0
      %1406 = vmatprep.subr.mxu0 0.0
      %1407 = vmatpush1.msra.mxu0 0.0
      %1408 = vmatprep.subr.mxu0 0.0
      %1409 = vmatpush1.msra.mxu0 0.0
      %1410 = vmatprep.subr.mxu0 0.0
      %1411 = vmatpush1.msra.mxu0 0.0
      %1412 = vmatprep.subr.mxu0 0.0
      %1413 = vmatpush1.msra.mxu0 0.0
      %1414 = vmatprep.subr.mxu0 0.0
      %1415 = vmatpush1.msra.mxu0 0.0
      %1416 = vmatprep.subr.mxu0 0.0
      %1417 = vmatpush1.msra.mxu0 0.0
      %1418 = vmatprep.subr.mxu0 0.0
      %1419 = vmatpush1.msra.mxu0 0.0
      %1420 = vmatprep.subr.mxu0 0.0
      %1421 = vmatpush1.msra.mxu0 0.0
      %1422 = vmatprep.subr.mxu0 0.0
      %1423 = vmatpush1.msra.mxu0 0.0
      %1424 = vmatprep.subr.mxu0 0.0
      %1425 = vmatpush1.msra.mxu0 0.0
      %1426 = vmatprep.subr.mxu0 0.0
      %1427 = vmatpush1.msra.mxu0 0.0
      %1428 = vmatprep.subr.mxu0 0.0
      %1429 = vmatpush1.msra.mxu0 0.0
      %1430 = vmatprep.subr.mxu0 0.0
      %1431 = vmatpush1.msra.mxu0 0.0
      %1432 = vmatprep.subr.mxu0 0.0
      %1433 = vmatpush1.msra.mxu0 0.0
      %1434 = vmatprep.subr.mxu0 0.0
      %1435 = vmatpush1.msra.mxu0 0.0
      %1436 = vmatprep.subr.mxu0 0.0
      %1437 = vmatpush1.msra.mxu0 0.0
      %1438 = vmatprep.subr.mxu0 0.0
      %1439 = vmatpush1.msra.mxu0 0.0
      %1440 = vmatprep.subr.mxu0 0.0
      %1441 = vmatpush1.msra.mxu0 0.0
      %1442 = vmatprep.subr.mxu0 0.0
      %1443 = vmatpush1.msra.mxu0 0.0
      %1444 = vmatprep.subr.mxu0 0.0
      %1445 = vmatpush1.msra.mxu0 0.0
      %1446 = vmatprep.subr.mxu0 0.0
      %1447 = vmatpush1.msra.mxu0 0.0
      %1448 = vmatprep.subr.mxu0 0.0
      %1449 = vmatpush1.msra.mxu0 0.0
      %1450 = vmatprep.mubr.f32.mxu0 0.0
      %1451 = vmatmul.mubr.f32.gmra.mrb[0].mxu0 %v1384
      %v1452 = vpop.f32.mrb[0].mxu0
      %v1453 = vadd.f32 %v1378, %v1452
      %v1454 = vpop.f32.mrb[0].mxu0
      %1455 = vdwg.mxu0
      %v1456 = vadd.f32 %v973, %v1453
      %s1457 = scalar_lea.vmem %s10, 1
      %v1458 = vld [vmem:[%s1457] sm:$0x1]
      %s1459 = scalar_lea.vmem %s11, 1
      %v1460 = vld [vmem:[%s1459] sm:$0x1]
      %v1461 = vsel %vm133, %v1456, 0.0
      %1462 = vadd.xlane.f32.xlu0 %v1461
      %v1463 = vpop.xlane.xlu0 %1462
      %v1464 = vmul.f32 %v1463, %v745
      %v1465 = vsub.f32 %v1456, %v1464
      %v1466 = vmul.f32 %v1465, %v1465
      %v1467 = vsel %vm133, %v1466, 0.0
      %1468 = vadd.xlane.f32.xlu0 %v1467
      %v1469 = vpop.xlane.xlu0 %1468
      %v1470 = vmul.f32 %v1469, %v745
      %v1471 = vadd.f32 %v1470, 1e-05
      %v1472 = vrsqrt.pop %v1471
      %v1473 = vmul.f32 %v1465, %v1472
      %v1475 = vlaneseq
      %v1476 = vshrl.u32 %v1475, 7
      %v1477 = vsub.s32 0, %v1476
      %v1478 = vrot.slane %v1458, %v1477
      %v1480 = vmul.f32 %v1473, %v1478
      %v1482 = vlaneseq
      %v1483 = vshrl.u32 %v1482, 7
      %v1484 = vsub.s32 0, %v1483
      %v1485 = vrot.slane %v1460, %v1484
      %v1487 = vadd.f32 %v1480, %v1485
      %s1488 = scalar_lea.vmem %s14, 32
      %v1489 = vld [vmem:[%s1488] sm:$0xff]
      %v1490 = vld [vmem:[%s1488 + $0x8] sm:$0xff]
      %v1491 = vld [vmem:[%s1488 + $0x10] sm:$0xff]
      %v1492 = vld [vmem:[%s1488 + $0x18] sm:$0xff]
      %s1493 = scalar_lea.vmem %s15, 1
      %v1494 = vld [vmem:[%s1493] sm:$0x1]
      %v1496 = vlaneseq
      %v1497 = vshrl.u32 %v1496, 7
      %v1498 = vsub.s32 0, %v1497
      %v1499 = vrot.slane %v1494, %v1498
      %v1502 = vsel %vm114, %v1487, 0
      %1504 = vmatprep.subr.mxu0 0.0
      %1505 = vmatpush1.msra.mxu0 %v1489
      %1506 = vmatprep.subr.mxu0 0.0
      %1507 = vmatpush1.msra.mxu0 %v1490
      %1508 = vmatprep.subr.mxu0 0.0
      %1509 = vmatpush1.msra.mxu0 %v1491
      %1510 = vmatprep.subr.mxu0 0.0
      %1511 = vmatpush1.msra.mxu0 %v1492
      %1512 = vmatprep.subr.mxu0 0.0
      %1513 = vmatpush1.msra.mxu0 0.0
      %1514 = vmatprep.subr.mxu0 0.0
      %1515 = vmatpush1.msra.mxu0 0.0
      %1516 = vmatprep.subr.mxu0 0.0
      %1517 = vmatpush1.msra.mxu0 0.0
      %1518 = vmatprep.subr.mxu0 0.0
      %1519 = vmatpush1.msra.mxu0 0.0
      %1520 = vmatprep.subr.mxu0 0.0
      %1521 = vmatpush1.msra.mxu0 0.0
      %1522 = vmatprep.subr.mxu0 0.0
      %1523 = vmatpush1.msra.mxu0 0.0
      %1524 = vmatprep.subr.mxu0 0.0
      %1525 = vmatpush1.msra.mxu0 0.0
      %1526 = vmatprep.subr.mxu0 0.0
      %1527 = vmatpush1.msra.mxu0 0.0
      %1528 = vmatprep.subr.mxu0 0.0
      %1529 = vmatpush1.msra.mxu0 0.0
      %1530 = vmatprep.subr.mxu0 0.0
      %1531 = vmatpush1.msra.mxu0 0.0
      %1532 = vmatprep.subr.mxu0 0.0
      %1533 = vmatpush1.msra.mxu0 0.0
      %1534 = vmatprep.subr.mxu0 0.0
      %1535 = vmatpush1.msra.mxu0 0.0
      %1536 = vmatprep.subr.mxu0 0.0
      %1537 = vmatpush1.msra.mxu0 0.0
      %1538 = vmatprep.subr.mxu0 0.0
      %1539 = vmatpush1.msra.mxu0 0.0
      %1540 = vmatprep.subr.mxu0 0.0
      %1541 = vmatpush1.msra.mxu0 0.0
      %1542 = vmatprep.subr.mxu0 0.0
      %1543 = vmatpush1.msra.mxu0 0.0
      %1544 = vmatprep.subr.mxu0 0.0
      %1545 = vmatpush1.msra.mxu0 0.0
      %1546 = vmatprep.subr.mxu0 0.0
      %1547 = vmatpush1.msra.mxu0 0.0
      %1548 = vmatprep.subr.mxu0 0.0
      %1549 = vmatpush1.msra.mxu0 0.0
      %1550 = vmatprep.subr.mxu0 0.0
      %1551 = vmatpush1.msra.mxu0 0.0
      %1552 = vmatprep.subr.mxu0 0.0
      %1553 = vmatpush1.msra.mxu0 0.0
      %1554 = vmatprep.subr.mxu0 0.0
      %1555 = vmatpush1.msra.mxu0 0.0
      %1556 = vmatprep.subr.mxu0 0.0
      %1557 = vmatpush1.msra.mxu0 0.0
      %1558 = vmatprep.subr.mxu0 0.0
      %1559 = vmatpush1.msra.mxu0 0.0
      %1560 = vmatprep.subr.mxu0 0.0
      %1561 = vmatpush1.msra.mxu0 0.0
      %1562 = vmatprep.subr.mxu0 0.0
      %1563 = vmatpush1.msra.mxu0 0.0
      %1564 = vmatprep.subr.mxu0 0.0
      %1565 = vmatpush1.msra.mxu0 0.0
      %1566 = vmatprep.subr.mxu0 0.0
      %1567 = vmatpush1.msra.mxu0 0.0
      %1568 = vmatprep.mubr.f32.mxu0 0.0
      %1569 = vmatmul.mubr.f32.gmra.mrb[0].mxu0 %v1502
      %v1570 = vpop.f32.mrb[0].mxu0
      %v1571 = vadd.f32 %v1499, %v1570
      %v1572 = vpop.f32.mrb[0].mxu0
      %1573 = vdwg.mxu0
      %v1574 = vmax.f32 %v1571, 0.0
      %s1575 = scalar_lea.vmem %s16, 64
      %v1576 = vld [vmem:[%s1575] sm:$0xff]
      %v1577 = vld [vmem:[%s1575 + $0x8] sm:$0xff]
      %v1578 = vld [vmem:[%s1575 + $0x10] sm:$0xff]
      %v1579 = vld [vmem:[%s1575 + $0x18] sm:$0xff]
      %v1580 = vld [vmem:[%s1575 + $0x20] sm:$0xff]
      %v1581 = vld [vmem:[%s1575 + $0x28] sm:$0xff]
      %v1582 = vld [vmem:[%s1575 + $0x30] sm:$0xff]
      %v1583 = vld [vmem:[%s1575 + $0x38] sm:$0xff]
      %s1584 = scalar_lea.vmem %s17, 1
      %v1585 = vld [vmem:[%s1584] sm:$0x1]
      %v1587 = vlaneseq
      %v1588 = vshrl.u32 %v1587, 7
      %v1589 = vsub.s32 0, %v1588
      %v1590 = vrot.slane %v1585, %v1589
      %v1593 = vsel %vm870, %v1574, 0
      %1595 = vmatprep.subr.mxu0 0.0
      %1596 = vmatpush1.msra.mxu0 %v1576
      %1597 = vmatprep.subr.mxu0 0.0
      %1598 = vmatpush1.msra.mxu0 %v1577
      %1599 = vmatprep.subr.mxu0 0.0
      %1600 = vmatpush1.msra.mxu0 %v1578
      %1601 = vmatprep.subr.mxu0 0.0
      %1602 = vmatpush1.msra.mxu0 %v1579
      %1603 = vmatprep.subr.mxu0 0.0
      %1604 = vmatpush1.msra.mxu0 %v1580
      %1605 = vmatprep.subr.mxu0 0.0
      %1606 = vmatpush1.msra.mxu0 %v1581
      %1607 = vmatprep.subr.mxu0 0.0
      %1608 = vmatpush1.msra.mxu0 %v1582
      %1609 = vmatprep.subr.mxu0 0.0
      %1610 = vmatpush1.msra.mxu0 %v1583
      %1611 = vmatprep.subr.mxu0 0.0
      %1612 = vmatpush1.msra.mxu0 0.0
      %1613 = vmatprep.subr.mxu0 0.0
      %1614 = vmatpush1.msra.mxu0 0.0
      %1615 = vmatprep.subr.mxu0 0.0
      %1616 = vmatpush1.msra.mxu0 0.0
      %1617 = vmatprep.subr.mxu0 0.0
      %1618 = vmatpush1.msra.mxu0 0.0
      %1619 = vmatprep.subr.mxu0 0.0
      %1620 = vmatpush1.msra.mxu0 0.0
      %1621 = vmatprep.subr.mxu0 0.0
      %1622 = vmatpush1.msra.mxu0 0.0
      %1623 = vmatprep.subr.mxu0 0.0
      %1624 = vmatpush1.msra.mxu0 0.0
      %1625 = vmatprep.subr.mxu0 0.0
      %1626 = vmatpush1.msra.mxu0 0.0
      %1627 = vmatprep.subr.mxu0 0.0
      %1628 = vmatpush1.msra.mxu0 0.0
      %1629 = vmatprep.subr.mxu0 0.0
      %1630 = vmatpush1.msra.mxu0 0.0
      %1631 = vmatprep.subr.mxu0 0.0
      %1632 = vmatpush1.msra.mxu0 0.0
      %1633 = vmatprep.subr.mxu0 0.0
      %1634 = vmatpush1.msra.mxu0 0.0
      %1635 = vmatprep.subr.mxu0 0.0
      %1636 = vmatpush1.msra.mxu0 0.0
      %1637 = vmatprep.subr.mxu0 0.0
      %1638 = vmatpush1.msra.mxu0 0.0
      %1639 = vmatprep.subr.mxu0 0.0
      %1640 = vmatpush1.msra.mxu0 0.0
      %1641 = vmatprep.subr.mxu0 0.0
      %1642 = vmatpush1.msra.mxu0 0.0
      %1643 = vmatprep.subr.mxu0 0.0
      %1644 = vmatpush1.msra.mxu0 0.0
      %1645 = vmatprep.subr.mxu0 0.0
      %1646 = vmatpush1.msra.mxu0 0.0
      %1647 = vmatprep.subr.mxu0 0.0
      %1648 = vmatpush1.msra.mxu0 0.0
      %1649 = vmatprep.subr.mxu0 0.0
      %1650 = vmatpush1.msra.mxu0 0.0
      %1651 = vmatprep.subr.mxu0 0.0
      %1652 = vmatpush1.msra.mxu0 0.0
      %1653 = vmatprep.subr.mxu0 0.0
      %1654 = vmatpush1.msra.mxu0 0.0
      %1655 = vmatprep.subr.mxu0 0.0
      %1656 = vmatpush1.msra.mxu0 0.0
      %1657 = vmatprep.subr.mxu0 0.0
      %1658 = vmatpush1.msra.mxu0 0.0
      %1659 = vmatprep.mubr.f32.mxu0 0.0
      %1660 = vmatmul.mubr.f32.gmra.mrb[0].mxu0 %v1593
      %v1661 = vpop.f32.mrb[0].mxu0
      %v1662 = vadd.f32 %v1590, %v1661
      %v1663 = vpop.f32.mrb[0].mxu0
      %1664 = vdwg.mxu0
      %v1665 = vadd.f32 %v1487, %v1662
      %s1666 = scalar_lea.vmem %s12, 1
      %v1667 = vld [vmem:[%s1666] sm:$0x1]
      %s1668 = scalar_lea.vmem %s13, 1
      %v1669 = vld [vmem:[%s1668] sm:$0x1]
      %v1670 = vsel %vm133, %v1665, 0.0
      %1671 = vadd.xlane.f32.xlu0 %v1670
      %v1672 = vpop.xlane.xlu0 %1671
      %v1673 = vmul.f32 %v1672, %v745
      %v1674 = vsub.f32 %v1665, %v1673
      %v1675 = vmul.f32 %v1674, %v1674
      %v1676 = vsel %vm133, %v1675, 0.0
      %1677 = vadd.xlane.f32.xlu0 %v1676
      %v1678 = vpop.xlane.xlu0 %1677
      %v1679 = vmul.f32 %v1678, %v745
      %v1680 = vadd.f32 %v1679, 1e-05
      %v1681 = vrsqrt.pop %v1680
      %v1682 = vmul.f32 %v1674, %v1681
      %v1684 = vlaneseq
      %v1685 = vshrl.u32 %v1684, 7
      %v1686 = vsub.s32 0, %v1685
      %v1687 = vrot.slane %v1667, %v1686
      %v1689 = vmul.f32 %v1682, %v1687
      %v1691 = vlaneseq
      %v1692 = vshrl.u32 %v1691, 7
      %v1693 = vsub.s32 0, %v1692
      %v1694 = vrot.slane %v1669, %v1693
      %v1696 = vadd.f32 %v1689, %v1694
      %v1697 = vld [vmem:[%s18] sm:$0x1]
      %v1698 = vld [vmem:[%s19] sm:$0x1]
      %v1699 = vsel %vm133, %v1696, 0.0
      %1700 = vadd.xlane.f32.xlu0 %v1699
      %v1701 = vpop.xlane.xlu0 %1700
      %v1702 = vmul.f32 %v1701, %v745
      %v1703 = vsub.f32 %v1696, %v1702
      %v1704 = vmul.f32 %v1703, %v1703
      %v1705 = vsel %vm133, %v1704, 0.0
      %1706 = vadd.xlane.f32.xlu0 %v1705
      %v1707 = vpop.xlane.xlu0 %1706
      %v1708 = vmul.f32 %v1707, %v745
      %v1709 = vadd.f32 %v1708, 1e-05
      %v1710 = vrsqrt.pop %v1709
      %v1711 = vmul.f32 %v1703, %v1710
      %v1713 = vlaneseq
      %v1714 = vshrl.u32 %v1713, 7
      %v1715 = vsub.s32 0, %v1714
      %v1716 = vrot.slane %v1697, %v1715
      %v1718 = vmul.f32 %v1711, %v1716
      %v1720 = vlaneseq
      %v1721 = vshrl.u32 %v1720, 7
      %v1722 = vsub.s32 0, %v1721
      %v1723 = vrot.slane %v1698, %v1722
      %v1725 = vadd.f32 %v1718, %v1723
      %s1726 = scalar_lea.vmem [#allocation7], %s155
      %1727 = vst.msk [vmem:[%s1726] sm:$0x3] %vm133, %v1725
    $region94: #{tpu_custom_call.1} parent=1 // loop_footer
      %s154 = sadd.s32 1, %s150
    $region95: #{tpu_custom_call.1} parent=1 // loop_footer_branch
      %149 = sbr.rel target = $region91
    $region96: #{tpu_custom_call.1} parent=1 // loop_exit
      _
    // Predicated region
    $region97: #{tpu_custom_call.1} parent=1 // pred_check
      _
    $region98: #{tpu_custom_call.1} parent=1 // pred_check_branch
      %1729 = sbr.rel (0) target = $region100
    $region99: #{tpu_custom_call.1} parent=1 // pred_region
      %s1731 = ssub.s32 512, 512
      %1732 = vsyncadd [#allocation4], %s1731
      %s1733 = sshll.u32 [#allocation7], 4
      %s1734 = int_to_ptr.vmem [resolvable:$true] %s1733
      %1739 = dma.vmem_to_hbm [thread:$0]  %s1734, 512, %s20, [#allocation4], 32, 32, 2
    $region100: #{tpu_custom_call.1} parent=1 // pred_fallthru
      _
    // Predicated region
    $region101: #{tpu_custom_call.1} parent=1 // pred_check
      _
    $region102: #{tpu_custom_call.1} parent=1 // pred_check_branch
      %1741 = sbr.rel (0) target = $region104
    $region103: #{tpu_custom_call.1} parent=1 // pred_region
      %s1743 = ssub.s32 2048, 2048
      %1744 = vsyncadd [#allocation9], %s1743
      %s1745 = sshll.u32 [#allocation8], 4
      %s1746 = int_to_ptr.vmem [resolvable:$true] %s1745
      %1751 = dma.vmem_to_hbm [thread:$0]  %s1746, 2048, %s21, [#allocation9], 128, 128, 8
    $region104: #{tpu_custom_call.1} parent=1 // pred_fallthru
      _
    // Predicated region
    $region105: #{tpu_custom_call.1} parent=1 // pred_check
      _
    $region106: #{tpu_custom_call.1} parent=1 // pred_check_branch
      %1753 = sbr.rel (0) target = $region108
    $region107: #{tpu_custom_call.1} parent=1 // pred_region
      %s1755 = ssub.s32 64, 64
      %1756 = vsyncadd [#allocation9], %s1755
      %s1757 = sshll.u32 [#allocation10], 4
      %s1758 = int_to_ptr.vmem [resolvable:$true] %s1757
      %1763 = dma.vmem_to_hbm [thread:$0]  %s1758, 64, %s22, [#allocation9], 32, 32, 2
    $region108: #{tpu_custom_call.1} parent=1 // pred_fallthru
      _
    // Predicated region
    $region109: #{tpu_custom_call.1} parent=1 // pred_check
      _
    $region110: #{tpu_custom_call.1} parent=1 // pred_check_branch
      %1765 = sbr.rel (0) target = $region112
    $region111: #{tpu_custom_call.1} parent=1 // pred_region
      %1766 = dma.done [#allocation4], 512
    $region112: #{tpu_custom_call.1} parent=1 // pred_fallthru
      _
    // Predicated region
    $region113: #{tpu_custom_call.1} parent=1 // pred_check
      _
    $region114: #{tpu_custom_call.1} parent=1 // pred_check_branch
      %1768 = sbr.rel (0) target = $region116
    $region115: #{tpu_custom_call.1} parent=1 // pred_region
      %1769 = dma.done [#allocation9], 2048
    $region116: #{tpu_custom_call.1} parent=1 // pred_fallthru
      _
    // Predicated region
    $region117: #{tpu_custom_call.1} parent=1 // pred_check
      _
    $region118: #{tpu_custom_call.1} parent=1 // pred_check_branch
      %1771 = sbr.rel (0) target = $region120
    $region119: #{tpu_custom_call.1} parent=1 // pred_region
      %1772 = dma.done [#allocation9], 64
    $region120: #{tpu_custom_call.1} parent=1 // pred_fallthru
      _
    %1773 = vsyncpa [#allocation3], 1
    %1774 = vsyncpa [#allocation6], 1
    %1775 = vsyncpa [#allocation4], 1
    %1776 = vsyncpa [#allocation9], 1

</llo_original>
